<compile_context>
chip_gen: v7x
topology: tpu7x:2x2x1
jax: 0.10.0
libtpu: 0.0.40
codegen_flags: <defaults>
</compile_context>

<pallas_src>
import numpy as np

import jax
import jax.numpy as jnp
from jax.experimental import pallas as pl
from jax.experimental.pallas import tpu as pltpu


# ------------------------------ fused kernel ------------------------------- #

def _nas_forward_kernel(x_ref, a1_ref, a2_ref, shm_ref, shp_ref, consts_ref,
                        wstack_ref, mio_ref, esum_ref, sel_ref, out_ref):
    # x_ref      : [R, W*Cin]   row slab of TB images, zero rows between images
    # a1_ref     : [3, W*Cin, W*C1]   banded conv1 weights (bf16), one per dy
    # a2_ref     : [3, W*C1,  W*C1]   banded conv2 weights (bf16)
    # shm/shp    : [R, R]       0/1 row-shift matrices (r <- r-1 / r <- r+1),
    #                           with H-padding rows masked out
    # consts_ref : [8, 128]     rows: s1, t1, s2, t2, linear bias (padded)
    # wstack_ref : [W*C1, 128]  linear weights, flatten perm folded, per-io groups
    # mio_ref    : [R, 128]     keeps only the weight group of pooled row io(r)
    # esum_ref   : [128, n_out] sums the per-io groups
    # sel_ref    : [TB, R]      batch <- row selector
    # out_ref    : [TB, n_out]
    f32 = jnp.float32

    def dot32(a, b):
        return jnp.dot(a.astype(f32), b.astype(f32), preferred_element_type=f32)

    x = x_ref[...].astype(f32)
    shm = shm_ref[...]
    shp = shp_ref[...]
    consts = consts_ref[...]
    s1, t1 = consts[0:1, :], consts[1:2, :]
    s2, t2 = consts[2:3, :], consts[3:4, :]

    # ---- node1: conv2d(Cin->C1) as 3 banded matmuls, row window via MXU shifts
    x_up = dot32(shm, x)          # row r -> input row r-1 (0 at the H padding)
    x_dn = dot32(shp, x)          # row r -> input row r+1
    c1 = dot32(x_up, a1_ref[0]) + dot32(x, a1_ref[1]) + dot32(x_dn, a1_ref[2])
    h1 = jnp.maximum(c1 * s1 + t1, 0.0)        # [R, 128]; pad rows never read

    # ---- node2: conv2d(C1->C1) + BN + residual(node1) + ReLU
    h1_up = dot32(shm, h1)        # masked shift == zero H padding for conv2
    h1_dn = dot32(shp, h1)
    c2 = dot32(h1_up, a2_ref[0]) + dot32(h1, a2_ref[1]) + dot32(h1_dn, a2_ref[2])
    h2 = jnp.maximum(c2 * s2 + t2 + h1, 0.0)

    # ---- node3: 2x2 max pool.  Row pairs via the same +1 shift matrix; column
    # pairs via a half-lane roll (even/odd spatial columns live in the two
    # 64-lane halves, so the roll direction does not matter under max).
    pairmax = jnp.maximum(h2, dot32(shp, h2))
    lmax = jnp.maximum(pairmax, pltpu.roll(pairmax, shift=64, axis=1))

    # ---- node4 + output layer: NCHW flatten permutation, pooled-row selection
    # and per-output-row linear weights are folded into matmuls.
    y = dot32(lmax, wstack_ref[...]) * mio_ref[...]        # [R, 128]
    rows = dot32(y, esum_ref[...])                         # [R, n_out]
    bias = consts[4:5, :out_ref.shape[-1]]
    out_ref[...] = dot32(sel_ref[...], rows) + bias        # [TB, n_out]


def nas_forward_fused(x_blocks, a1, a2, shm, shp, consts, wstack, mio, esum,
                      sel):
    nb, R, LX = x_blocks.shape
    TB = sel.shape[0]
    n_out = esum.shape[-1]

    def _const_spec(arr):
        # whole array resident in VMEM; constant block index -> fetched once
        return pl.BlockSpec(arr.shape, lambda i, nd=arr.ndim: (0,) * nd)

    return pl.pallas_call(
        _nas_forward_kernel,
        out_shape=jax.ShapeDtypeStruct((nb, TB, n_out), jnp.float32),
        grid=(nb,),
        in_specs=[pl.BlockSpec((None, R, LX), lambda i: (i, 0, 0)),
                  _const_spec(a1), _const_spec(a2), _const_spec(shm),
                  _const_spec(shp), _const_spec(consts), _const_spec(wstack),
                  _const_spec(mio), _const_spec(esum), _const_spec(sel)],
        out_specs=pl.BlockSpec((None, TB, n_out), lambda i: (i, 0, 0)),
        compiler_params=pltpu.CompilerParams(
            dimension_semantics=("parallel",)),
    )(x_blocks, a1, a2, shm, shp, consts, wstack, mio, esum, sel)


# --------------------------- weight preprocessing --------------------------- #

def _band_matrices(w, in_j, in_c, out_j, out_c):
    """3 banded matrices A_dy for a 3x3 'same' conv, one per kernel row dy.

    w: [3, 3, Cin, Cout] (HWIO).  A_dy[p, q] = w[dy, dx, in_c[p], out_c[q]] with
    dx = in_j[p] - out_j[q] + 1 if dx in {0,1,2} else 0 (W zero-padding folded).
    """
    dx = in_j[:, None] - out_j[None, :] + 1
    valid = (dx >= 0) & (dx <= 2)
    dxc = jnp.clip(dx, 0, 2)
    mats = []
    for dy in range(3):
        vals = w[dy][dxc, in_c[:, None], out_c[None, :]]
        mats.append(jnp.where(valid, vals, 0.0))
    return jnp.stack(mats).astype(jnp.float32)


# ------------------------------ NAS model ---------------------------------- #

class NASModelPallas:
    """Concrete instantiation of NASTorchModel.forward for the graph above."""

    def __init__(self, key, in_ch=4, hidden=8, hw=16, n_classes=10):
        k1, k2, k3 = jax.random.split(key, 3)
        C1 = hidden
        self.in_ch, self.c1, self.hw = in_ch, C1, hw
        # lane-layout assumptions the kernel relies on (per review)
        assert hw * C1 == 128, "kernel assumes lane-dense [H, W*C1] == [., 128]"
        assert hw % 2 == 0, "2x2 pooling assumes even spatial extent"

        def bf16_round(a):
            # master weights kept bf16-representable so the bf16 copies shipped
            # to the kernel are exact vs the reference
            return a.astype(jnp.bfloat16).astype(jnp.float32)

        # conv weights stored as [ky, kx, Cin, Cout] (HWIO)
        self.w1 = bf16_round(
            jax.random.normal(k1, (3, 3, in_ch, C1), jnp.float32)
            / jnp.sqrt(9.0 * in_ch))
        self.b1 = 0.01 * jnp.arange(C1, dtype=jnp.float32)
        self.w2 = bf16_round(
            jax.random.normal(k2, (3, 3, C1, C1), jnp.float32)
            / jnp.sqrt(9.0 * C1))
        self.b2 = 0.02 * jnp.arange(C1, dtype=jnp.float32)
        # deterministic (non-trivial) BatchNorm eval-mode parameters
        idx = jnp.arange(C1, dtype=jnp.float32)
        self.g1, self.be1 = 1.0 + 0.1 * idx, 0.05 * idx
        self.m1, self.v1 = 0.01 * idx, 1.0 + 0.02 * idx
        self.g2, self.be2 = 1.0 - 0.05 * idx, -0.03 * idx
        self.m2, self.v2 = 0.02 * idx, 1.0 + 0.01 * idx

        Ho = Wo = hw // 2
        flat_dim = C1 * Ho * Wo
        self.n_out = n_classes if n_classes > 2 else 1   # matches init_model()
        assert Ho * self.n_out <= 128, "per-io linear groups must fit 128 lanes"
        # torch-style linear: row index == NCHW flat index of the pooled tensor
        self.wo = bf16_round(
            jax.random.normal(k3, (flat_dim, self.n_out), jnp.float32)
            / jnp.sqrt(float(flat_dim)))
        self.bo = 0.001 * jnp.arange(self.n_out, dtype=jnp.float32)

        self._build_kernel_params()
        self._block_cache = {}

    # -- model-wide constants (independent of the batch-block size) ---------- #
    def _build_kernel_params(self):
        Cin, C1, W, n_out = self.in_ch, self.c1, self.hw, self.n_out
        Ho = W // 2

        # Lane layouts:
        #   input x slab : lane = j*Cin + ci
        #   h1/h2 slabs  : lane = 64*(j%2) + 8*(j//2) + c   (even|odd column
        #   halves, so the 2x2 maxpool column pairing is a half-lane roll)
        lane_x = jnp.arange(W * Cin)
        jx, cx = lane_x // Cin, lane_x % Cin
        lane_h = jnp.arange(W * C1)
        g = Ho * C1
        jh = 2 * ((lane_h % g) // C1) + lane_h // g
        ch = lane_h % C1
        self.a1 = _band_matrices(self.w1, jx, cx, jh, ch).astype(jnp.bfloat16)
        self.a2 = _band_matrices(self.w2, jh, ch, jh, ch).astype(jnp.bfloat16)

        # conv bias + eval BatchNorm folded into per-lane scale/shift; packed
        # with the linear bias into ONE small [8,128] constant (one DMA).
        def fold(gamma, beta, mean, var, bias, eps=1e-5):
            scale = gamma / jnp.sqrt(var + eps)
            return scale, beta + scale * (bias - mean)

        s1, t1 = fold(self.g1, self.be1, self.m1, self.v1, self.b1)
        s2, t2 = fold(self.g2, self.be2, self.m2, self.v2, self.b2)
        consts = np.zeros((8, 128), np.float32)
        consts[0, :] = np.asarray(jnp.tile(s1, W))
        consts[1, :] = np.asarray(jnp.tile(t1, W))
        consts[2, :] = np.asarray(jnp.tile(s2, W))
        consts[3, :] = np.asarray(jnp.tile(t2, W))
        consts[4, :n_out] = np.asarray(self.bo)
        self.consts = jnp.asarray(consts)

        # Linear weights with the torch NCHW flatten permutation folded in.
        # wstack[l, io*n_out + o] = wo[c*Ho*Wo + io*Wo + jo, o] for lanes l < 64
        # (jo = l//C1, c = l%C1); duplicate odd-column lanes l >= 64 get zero.
        wo = np.asarray(self.wo)
        wstack = np.zeros((W * C1, 128), np.float32)
        l = np.arange(Ho * C1)
        jo, c = l // C1, l % C1
        for io in range(Ho):
            k = c * (Ho * Ho) + io * Ho + jo
            wstack[:Ho * C1, io * n_out:(io + 1) * n_out] = wo[k, :]
        self.wstack = jnp.asarray(wstack).astype(jnp.bfloat16)

        # esum sums the per-io groups back down to n_out outputs
        esum = np.zeros((128, n_out), np.float32)
        for io in range(Ho):
            esum[io * n_out:(io + 1) * n_out, :] = np.eye(n_out)
        self.esum = jnp.asarray(esum)

    # -- constants that depend on the batch-block size TB -------------------- #
    def _block_constants(self, TB):
        if TB in self._block_cache:
            return self._block_cache[TB]
        H, n_out = self.hw, self.n_out
        HP = H + 2
        R = TB * HP
        rb = np.arange(R) % HP
        valid = (rb >= 1) & (rb <= H)      # image rows (not H-padding rows)

        shm = np.zeros((R, R), np.float32)   # (shm @ v)[r] = v[r-1], 0 at pads
        shp = np.zeros((R, R), np.float32)   # (shp @ v)[r] = v[r+1], 0 at pads
        for r in range(R):
            if valid[r]:
                if r - 1 >= 0 and valid[r - 1]:
                    shm[r, r - 1] = 1.0
                if r + 1 < R and valid[r + 1]:
                    shp[r, r + 1] = 1.0

        # mio keeps, per row, only the weight group of its pooled output row io
        mio = np.zeros((R, 128), np.float32)
        for r in range(R):
            if valid[r] and (rb[r] % 2 == 1):
                io = (rb[r] - 1) // 2
                mio[r, io * n_out:(io + 1) * n_out] = 1.0

        # sel sums every row of a batch into that batch's output row
        sel = np.zeros((TB, R), np.float32)
        for b in range(TB):
            sel[b, b * HP:(b + 1) * HP] = 1.0

        out = tuple(jnp.asarray(a) for a in (shm, shp, mio, sel))
        self._block_cache[TB] = out
        return out

    def __call__(self, x_nchw, batch_block=None):
        B, Cin, H, W = x_nchw.shape
        assert Cin == self.in_ch and H == self.hw and W == self.hw
        TB = batch_block if batch_block is not None else min(B, 8)
        while B % TB:
            TB -= 1
        shm, shp, mio, sel = self._block_constants(TB)

        # Tiny XLA prep on the input: NCHW -> row slab [nb, TB*(H+2), W*Cin]
        # with one zero row above/below each image (the conv H padding).
        x_rows = (jnp.transpose(x_nchw, (0, 2, 3, 1))
                  .reshape(B, H, W * Cin).astype(jnp.float32))
        x_pad = jnp.pad(x_rows, ((0, 0), (1, 1), (0, 0)))
        x_blocks = x_pad.reshape(B // TB, TB * (H + 2), W * Cin)

        out = nas_forward_fused(x_blocks, self.a1, self.a2, shm, shp,
                                self.consts, self.wstack, mio, self.esum, sel)
        return out.reshape(B, self.n_out)


# ------------------------- pure-JAX reference check ------------------------- #

def reference_forward(model, x_nchw):
    """Plain XLA implementation of the same NASTorchModel.forward graph."""
    x = jnp.transpose(x_nchw, (0, 2, 3, 1)).astype(jnp.float32)   # NHWC

    def conv(inp, w):
        return jax.lax.conv_general_dilated(
            inp, w, window_strides=(1, 1), padding="SAME",
            dimension_numbers=("NHWC", "HWIO", "NHWC"),
            precision=jax.lax.Precision.HIGHEST)

    def bn(z, gamma, beta, mean, var, eps=1e-5):
        return gamma * (z - mean) / jnp.sqrt(var + eps) + beta

    h1 = jax.nn.relu(bn(conv(x, model.w1) + model.b1,
                        model.g1, model.be1, model.m1, model.v1))
    h2 = jax.nn.relu(bn(conv(h1, model.w2) + model.b2,
                        model.g2, model.be2, model.m2, model.v2) + h1)
    p = jax.lax.reduce_window(h2, -jnp.inf, jax.lax.max,
                              (1, 2, 2, 1), (1, 2, 2, 1), "VALID")
    flat = jnp.transpose(p, (0, 3, 1, 2)).reshape(p.shape[0], -1)  # NCHW flatten
    return jnp.dot(flat, model.wo,
                   precision=jax.lax.Precision.HIGHEST) + model.bo


if __name__ == "__main__":
    key = jax.random.PRNGKey(0)
    kx, kp = jax.random.split(key)
    x = jax.random.normal(kx, (2, 4, 16, 16), jnp.float32)   # NCHW input
    model = NASModelPallas(kp, in_ch=4, hidden=8, hw=16, n_classes=10)

    out = jax.jit(model.__call__)(x)
    jax.block_until_ready(out)
    assert out.shape == (2, 10) and out.dtype == jnp.float32

    ref = reference_forward(model, x)
    assert jnp.allclose(out, ref, rtol=2e-2, atol=2e-2), (
        f"max abs diff {jnp.max(jnp.abs(out - ref))}")

    print("KERNEL_OK")
</pallas_src>

<mosaic_0001>
module attributes {stable_mosaic.version = 11 : i64} {
  func.func @_nas_forward_kernel(%arg0: i32, %arg1: memref<1x36x64xf32, #tpu.memory_space<vmem>>, %arg2: memref<3x64x128xbf16, #tpu.memory_space<vmem>>, %arg3: memref<3x128x128xbf16, #tpu.memory_space<vmem>>, %arg4: memref<36x36xf32, #tpu.memory_space<vmem>>, %arg5: memref<36x36xf32, #tpu.memory_space<vmem>>, %arg6: memref<8x128xf32, #tpu.memory_space<vmem>>, %arg7: memref<128x128xbf16, #tpu.memory_space<vmem>>, %arg8: memref<36x128xf32, #tpu.memory_space<vmem>>, %arg9: memref<128x10xf32, #tpu.memory_space<vmem>>, %arg10: memref<2x36xf32, #tpu.memory_space<vmem>>, %arg11: memref<1x2x10xf32, #tpu.memory_space<vmem>>) attributes {dimension_semantics = [#tpu.dimension_semantics<parallel>], iteration_bounds = array<i64: 1>, scalar_prefetch = 0 : i64, scratch_operands = 0 : i64, tpu.core_type = #tpu.core_type<tc>, window_params = [{transform_indices = @transform_0, window_bounds = array<i64: 1, 36, 64>}, {pipeline_mode = #tpu.pipeline_mode<synchronous>, transform_indices = @transform_1, window_bounds = array<i64: 3, 64, 128>}, {pipeline_mode = #tpu.pipeline_mode<synchronous>, transform_indices = @transform_2, window_bounds = array<i64: 3, 128, 128>}, {pipeline_mode = #tpu.pipeline_mode<synchronous>, transform_indices = @transform_3, window_bounds = array<i64: 36, 36>}, {pipeline_mode = #tpu.pipeline_mode<synchronous>, transform_indices = @transform_4, window_bounds = array<i64: 36, 36>}, {pipeline_mode = #tpu.pipeline_mode<synchronous>, transform_indices = @transform_5, window_bounds = array<i64: 8, 128>}, {pipeline_mode = #tpu.pipeline_mode<synchronous>, transform_indices = @transform_6, window_bounds = array<i64: 128, 128>}, {pipeline_mode = #tpu.pipeline_mode<synchronous>, transform_indices = @transform_7, window_bounds = array<i64: 36, 128>}, {pipeline_mode = #tpu.pipeline_mode<synchronous>, transform_indices = @transform_8, window_bounds = array<i64: 128, 10>}, {pipeline_mode = #tpu.pipeline_mode<synchronous>, transform_indices = @transform_9, window_bounds = array<i64: 2, 36>}, {transform_indices = @transform_10, window_bounds = array<i64: 1, 2, 10>}]} {
    %c0 = arith.constant 0 : index
    %c0_0 = arith.constant 0 : index
    %c0_1 = arith.constant 0 : index
    %0 = vector.load %arg1[%c0, %c0_0, %c0_1] : memref<1x36x64xf32, #tpu.memory_space<vmem>>, vector<1x36x64xf32>
    %1 = vector.shape_cast %0 : vector<1x36x64xf32> to vector<36x64xf32>
    %c0_2 = arith.constant 0 : index
    %c0_3 = arith.constant 0 : index
    %2 = vector.load %arg4[%c0_2, %c0_3] : memref<36x36xf32, #tpu.memory_space<vmem>>, vector<36x36xf32>
    %c0_4 = arith.constant 0 : index
    %c0_5 = arith.constant 0 : index
    %3 = vector.load %arg5[%c0_4, %c0_5] : memref<36x36xf32, #tpu.memory_space<vmem>>, vector<36x36xf32>
    %c0_6 = arith.constant 0 : index
    %c0_7 = arith.constant 0 : index
    %4 = vector.load %arg6[%c0_6, %c0_7] : memref<8x128xf32, #tpu.memory_space<vmem>>, vector<8x128xf32>
    %5 = vector.extract_strided_slice %4 {offsets = [0, 0], sizes = [1, 128], strides = [1, 1]} : vector<8x128xf32> to vector<1x128xf32>
    %6 = vector.extract_strided_slice %4 {offsets = [1, 0], sizes = [1, 128], strides = [1, 1]} : vector<8x128xf32> to vector<1x128xf32>
    %7 = vector.extract_strided_slice %4 {offsets = [2, 0], sizes = [1, 128], strides = [1, 1]} : vector<8x128xf32> to vector<1x128xf32>
    %8 = vector.extract_strided_slice %4 {offsets = [3, 0], sizes = [1, 128], strides = [1, 1]} : vector<8x128xf32> to vector<1x128xf32>
    %cst = arith.constant dense<0.000000e+00> : vector<36x64xf32>
    %9 = tpu.matmul %2, %1, %cst {dimension_numbers = #tpu.dot_dimension_numbers<[1], [0], [0], [1], [0, 0, 1, 1], [], []>} : vector<36x36xf32>, vector<36x64xf32>, vector<36x64xf32> -> vector<36x64xf32>
    %cst_8 = arith.constant dense<0.000000e+00> : vector<36x64xf32>
    %10 = tpu.matmul %3, %1, %cst_8 {dimension_numbers = #tpu.dot_dimension_numbers<[1], [0], [0], [1], [0, 0, 1, 1], [], []>} : vector<36x36xf32>, vector<36x64xf32>, vector<36x64xf32> -> vector<36x64xf32>
    %c0_9 = arith.constant 0 : index
    %c0_10 = arith.constant 0 : index
    %c0_11 = arith.constant 0 : index
    %11 = vector.load %arg2[%c0_9, %c0_10, %c0_11] : memref<3x64x128xbf16, #tpu.memory_space<vmem>>, vector<1x64x128xbf16>
    %12 = vector.shape_cast %11 : vector<1x64x128xbf16> to vector<64x128xbf16>
    %13 = arith.extf %12 : vector<64x128xbf16> to vector<64x128xf32>
    %cst_12 = arith.constant dense<0.000000e+00> : vector<36x128xf32>
    %14 = tpu.matmul %9, %13, %cst_12 {dimension_numbers = #tpu.dot_dimension_numbers<[1], [0], [0], [1], [0, 0, 1, 1], [], []>} : vector<36x64xf32>, vector<64x128xf32>, vector<36x128xf32> -> vector<36x128xf32>
    %c1 = arith.constant 1 : index
    %c0_13 = arith.constant 0 : index
    %c0_14 = arith.constant 0 : index
    %15 = vector.load %arg2[%c1, %c0_13, %c0_14] : memref<3x64x128xbf16, #tpu.memory_space<vmem>>, vector<1x64x128xbf16>
    %16 = vector.shape_cast %15 : vector<1x64x128xbf16> to vector<64x128xbf16>
    %17 = arith.extf %16 : vector<64x128xbf16> to vector<64x128xf32>
    %cst_15 = arith.constant dense<0.000000e+00> : vector<36x128xf32>
    %18 = tpu.matmul %1, %17, %cst_15 {dimension_numbers = #tpu.dot_dimension_numbers<[1], [0], [0], [1], [0, 0, 1, 1], [], []>} : vector<36x64xf32>, vector<64x128xf32>, vector<36x128xf32> -> vector<36x128xf32>
    %19 = arith.addf %14, %18 : vector<36x128xf32>
    %c2 = arith.constant 2 : index
    %c0_16 = arith.constant 0 : index
    %c0_17 = arith.constant 0 : index
    %20 = vector.load %arg2[%c2, %c0_16, %c0_17] : memref<3x64x128xbf16, #tpu.memory_space<vmem>>, vector<1x64x128xbf16>
    %21 = vector.shape_cast %20 : vector<1x64x128xbf16> to vector<64x128xbf16>
    %22 = arith.extf %21 : vector<64x128xbf16> to vector<64x128xf32>
    %cst_18 = arith.constant dense<0.000000e+00> : vector<36x128xf32>
    %23 = tpu.matmul %10, %22, %cst_18 {dimension_numbers = #tpu.dot_dimension_numbers<[1], [0], [0], [1], [0, 0, 1, 1], [], []>} : vector<36x64xf32>, vector<64x128xf32>, vector<36x128xf32> -> vector<36x128xf32>
    %24 = arith.addf %19, %23 : vector<36x128xf32>
    %25 = vector.broadcast %5 : vector<1x128xf32> to vector<36x128xf32>
    %26 = arith.mulf %24, %25 : vector<36x128xf32>
    %27 = vector.broadcast %6 : vector<1x128xf32> to vector<36x128xf32>
    %28 = arith.addf %26, %27 : vector<36x128xf32>
    %cst_19 = arith.constant 0.000000e+00 : f32
    %29 = vector.broadcast %cst_19 : f32 to vector<36x128xf32>
    %30 = arith.maximumf %28, %29 : vector<36x128xf32>
    %cst_20 = arith.constant dense<0.000000e+00> : vector<36x128xf32>
    %31 = tpu.matmul %2, %30, %cst_20 {dimension_numbers = #tpu.dot_dimension_numbers<[1], [0], [0], [1], [0, 0, 1, 1], [], []>} : vector<36x36xf32>, vector<36x128xf32>, vector<36x128xf32> -> vector<36x128xf32>
    %cst_21 = arith.constant dense<0.000000e+00> : vector<36x128xf32>
    %32 = tpu.matmul %3, %30, %cst_21 {dimension_numbers = #tpu.dot_dimension_numbers<[1], [0], [0], [1], [0, 0, 1, 1], [], []>} : vector<36x36xf32>, vector<36x128xf32>, vector<36x128xf32> -> vector<36x128xf32>
    %c0_22 = arith.constant 0 : index
    %c0_23 = arith.constant 0 : index
    %c0_24 = arith.constant 0 : index
    %33 = vector.load %arg3[%c0_22, %c0_23, %c0_24] : memref<3x128x128xbf16, #tpu.memory_space<vmem>>, vector<1x128x128xbf16>
    %34 = vector.shape_cast %33 : vector<1x128x128xbf16> to vector<128x128xbf16>
    %35 = arith.extf %34 : vector<128x128xbf16> to vector<128x128xf32>
    %cst_25 = arith.constant dense<0.000000e+00> : vector<36x128xf32>
    %36 = tpu.matmul %31, %35, %cst_25 {dimension_numbers = #tpu.dot_dimension_numbers<[1], [0], [0], [1], [0, 0, 1, 1], [], []>} : vector<36x128xf32>, vector<128x128xf32>, vector<36x128xf32> -> vector<36x128xf32>
    %c1_26 = arith.constant 1 : index
    %c0_27 = arith.constant 0 : index
    %c0_28 = arith.constant 0 : index
    %37 = vector.load %arg3[%c1_26, %c0_27, %c0_28] : memref<3x128x128xbf16, #tpu.memory_space<vmem>>, vector<1x128x128xbf16>
    %38 = vector.shape_cast %37 : vector<1x128x128xbf16> to vector<128x128xbf16>
    %39 = arith.extf %38 : vector<128x128xbf16> to vector<128x128xf32>
    %cst_29 = arith.constant dense<0.000000e+00> : vector<36x128xf32>
    %40 = tpu.matmul %30, %39, %cst_29 {dimension_numbers = #tpu.dot_dimension_numbers<[1], [0], [0], [1], [0, 0, 1, 1], [], []>} : vector<36x128xf32>, vector<128x128xf32>, vector<36x128xf32> -> vector<36x128xf32>
    %41 = arith.addf %36, %40 : vector<36x128xf32>
    %c2_30 = arith.constant 2 : index
    %c0_31 = arith.constant 0 : index
    %c0_32 = arith.constant 0 : index
    %42 = vector.load %arg3[%c2_30, %c0_31, %c0_32] : memref<3x128x128xbf16, #tpu.memory_space<vmem>>, vector<1x128x128xbf16>
    %43 = vector.shape_cast %42 : vector<1x128x128xbf16> to vector<128x128xbf16>
    %44 = arith.extf %43 : vector<128x128xbf16> to vector<128x128xf32>
    %cst_33 = arith.constant dense<0.000000e+00> : vector<36x128xf32>
    %45 = tpu.matmul %32, %44, %cst_33 {dimension_numbers = #tpu.dot_dimension_numbers<[1], [0], [0], [1], [0, 0, 1, 1], [], []>} : vector<36x128xf32>, vector<128x128xf32>, vector<36x128xf32> -> vector<36x128xf32>
    %46 = arith.addf %41, %45 : vector<36x128xf32>
    %47 = vector.broadcast %7 : vector<1x128xf32> to vector<36x128xf32>
    %48 = arith.mulf %46, %47 : vector<36x128xf32>
    %49 = vector.broadcast %8 : vector<1x128xf32> to vector<36x128xf32>
    %50 = arith.addf %48, %49 : vector<36x128xf32>
    %51 = arith.addf %50, %30 : vector<36x128xf32>
    %cst_34 = arith.constant 0.000000e+00 : f32
    %52 = vector.broadcast %cst_34 : f32 to vector<36x128xf32>
    %53 = arith.maximumf %51, %52 : vector<36x128xf32>
    %cst_35 = arith.constant dense<0.000000e+00> : vector<36x128xf32>
    %54 = tpu.matmul %3, %53, %cst_35 {dimension_numbers = #tpu.dot_dimension_numbers<[1], [0], [0], [1], [0, 0, 1, 1], [], []>} : vector<36x36xf32>, vector<36x128xf32>, vector<36x128xf32> -> vector<36x128xf32>
    %55 = arith.maximumf %53, %54 : vector<36x128xf32>
    %c64_i32 = arith.constant 64 : i32
    %56 = tpu.dynamic_rotate %55 by %c64_i32 dim 1 : vector<36x128xf32>, i32 -> vector<36x128xf32>
    %57 = arith.maximumf %55, %56 : vector<36x128xf32>
    %c0_36 = arith.constant 0 : index
    %c0_37 = arith.constant 0 : index
    %58 = vector.load %arg7[%c0_36, %c0_37] : memref<128x128xbf16, #tpu.memory_space<vmem>>, vector<128x128xbf16>
    %59 = arith.extf %58 : vector<128x128xbf16> to vector<128x128xf32>
    %cst_38 = arith.constant dense<0.000000e+00> : vector<36x128xf32>
    %60 = tpu.matmul %57, %59, %cst_38 {dimension_numbers = #tpu.dot_dimension_numbers<[1], [0], [0], [1], [0, 0, 1, 1], [], []>} : vector<36x128xf32>, vector<128x128xf32>, vector<36x128xf32> -> vector<36x128xf32>
    %c0_39 = arith.constant 0 : index
    %c0_40 = arith.constant 0 : index
    %61 = vector.load %arg8[%c0_39, %c0_40] : memref<36x128xf32, #tpu.memory_space<vmem>>, vector<36x128xf32>
    %62 = arith.mulf %60, %61 : vector<36x128xf32>
    %c0_41 = arith.constant 0 : index
    %c0_42 = arith.constant 0 : index
    %63 = vector.load %arg9[%c0_41, %c0_42] : memref<128x10xf32, #tpu.memory_space<vmem>>, vector<128x10xf32>
    %cst_43 = arith.constant dense<0.000000e+00> : vector<36x10xf32>
    %64 = tpu.matmul %62, %63, %cst_43 {dimension_numbers = #tpu.dot_dimension_numbers<[1], [0], [0], [1], [0, 0, 1, 1], [], []>} : vector<36x128xf32>, vector<128x10xf32>, vector<36x10xf32> -> vector<36x10xf32>
    %65 = vector.extract_strided_slice %4 {offsets = [4, 0], sizes = [1, 10], strides = [1, 1]} : vector<8x128xf32> to vector<1x10xf32>
    %c0_44 = arith.constant 0 : index
    %c0_45 = arith.constant 0 : index
    %66 = vector.load %arg10[%c0_44, %c0_45] : memref<2x36xf32, #tpu.memory_space<vmem>>, vector<2x36xf32>
    %cst_46 = arith.constant dense<0.000000e+00> : vector<2x10xf32>
    %67 = tpu.matmul %66, %64, %cst_46 {dimension_numbers = #tpu.dot_dimension_numbers<[1], [0], [0], [1], [0, 0, 1, 1], [], []>} : vector<2x36xf32>, vector<36x10xf32>, vector<2x10xf32> -> vector<2x10xf32>
    %68 = vector.broadcast %65 : vector<1x10xf32> to vector<2x10xf32>
    %69 = arith.addf %67, %68 : vector<2x10xf32>
    %c0_47 = arith.constant 0 : index
    %c0_48 = arith.constant 0 : index
    %c0_49 = arith.constant 0 : index
    %70 = vector.load %arg11[%c0_47, %c0_48, %c0_49] : memref<1x2x10xf32, #tpu.memory_space<vmem>>, vector<1x2x10xf32>
    %71 = vector.shape_cast %70 : vector<1x2x10xf32> to vector<2x10xf32>
    %72 = vector.shape_cast %69 : vector<2x10xf32> to vector<1x2x10xf32>
    tpu.vector_store %arg11[%c0_47, %c0_48, %c0_49], %72 {strides = array<i32>} : memref<1x2x10xf32, #tpu.memory_space<vmem>>, vector<1x2x10xf32>,
    return
  }
  func.func @transform_0(%arg0: i32) -> (i32, i32, i32) {
    %c0_i32 = arith.constant 0 : i32
    %c0_i32_0 = arith.constant 0 : i32
    %c0_i32_1 = arith.constant 0 : i32
    return %arg0, %c0_i32, %c0_i32_0 : i32, i32, i32
  }
  func.func @transform_1(%arg0: i32) -> (i32, i32, i32) {
    %c0_i32 = arith.constant 0 : i32
    %c0_i32_0 = arith.constant 0 : i32
    %c0_i32_1 = arith.constant 0 : i32
    %c0_i32_2 = arith.constant 0 : i32
    return %c0_i32, %c0_i32_0, %c0_i32_1 : i32, i32, i32
  }
  func.func @transform_2(%arg0: i32) -> (i32, i32, i32) {
    %c0_i32 = arith.constant 0 : i32
    %c0_i32_0 = arith.constant 0 : i32
    %c0_i32_1 = arith.constant 0 : i32
    %c0_i32_2 = arith.constant 0 : i32
    return %c0_i32, %c0_i32_0, %c0_i32_1 : i32, i32, i32
  }
  func.func @transform_3(%arg0: i32) -> (i32, i32) {
    %c0_i32 = arith.constant 0 : i32
    %c0_i32_0 = arith.constant 0 : i32
    %c0_i32_1 = arith.constant 0 : i32
    return %c0_i32, %c0_i32_0 : i32, i32
  }
  func.func @transform_4(%arg0: i32) -> (i32, i32) {
    %c0_i32 = arith.constant 0 : i32
    %c0_i32_0 = arith.constant 0 : i32
    %c0_i32_1 = arith.constant 0 : i32
    return %c0_i32, %c0_i32_0 : i32, i32
  }
  func.func @transform_5(%arg0: i32) -> (i32, i32) {
    %c0_i32 = arith.constant 0 : i32
    %c0_i32_0 = arith.constant 0 : i32
    %c0_i32_1 = arith.constant 0 : i32
    return %c0_i32, %c0_i32_0 : i32, i32
  }
  func.func @transform_6(%arg0: i32) -> (i32, i32) {
    %c0_i32 = arith.constant 0 : i32
    %c0_i32_0 = arith.constant 0 : i32
    %c0_i32_1 = arith.constant 0 : i32
    return %c0_i32, %c0_i32_0 : i32, i32
  }
  func.func @transform_7(%arg0: i32) -> (i32, i32) {
    %c0_i32 = arith.constant 0 : i32
    %c0_i32_0 = arith.constant 0 : i32
    %c0_i32_1 = arith.constant 0 : i32
    return %c0_i32, %c0_i32_0 : i32, i32
  }
  func.func @transform_8(%arg0: i32) -> (i32, i32) {
    %c0_i32 = arith.constant 0 : i32
    %c0_i32_0 = arith.constant 0 : i32
    %c0_i32_1 = arith.constant 0 : i32
    return %c0_i32, %c0_i32_0 : i32, i32
  }
  func.func @transform_9(%arg0: i32) -> (i32, i32) {
    %c0_i32 = arith.constant 0 : i32
    %c0_i32_0 = arith.constant 0 : i32
    %c0_i32_1 = arith.constant 0 : i32
    return %c0_i32, %c0_i32_0 : i32, i32
  }
  func.func @transform_10(%arg0: i32) -> (i32, i32, i32) {
    %c0_i32 = arith.constant 0 : i32
    %c0_i32_0 = arith.constant 0 : i32
    %c0_i32_1 = arith.constant 0 : i32
    return %arg0, %c0_i32, %c0_i32_0 : i32, i32, i32
  }
}

</mosaic_0001>

<llo_original>
// kernel: a_call__.1
$region0: #{a_call__.1}
  #allocation0 [shape = 'u32[]', space=smem, size = 0x4, offset = 0x4, fixed_abs, tag = 'smem constant byte address 0x4 - core index']
  #allocation1 [shape = 'u32[144,128]{1,0:T(1,128)}', space=vmem, size = 0x12000, scoped, tag = 'internal scratch']
  %s0 = inlined_call_operand.vmem [shape: f32[1,36,64], index: 0, kind: input, shape index: {}]
  %s1 = inlined_call_operand.vmem [shape: bf16[3,64,128], index: 1, kind: input, shape index: {}]
  %s2 = inlined_call_operand.vmem [shape: bf16[3,128,128], index: 2, kind: input, shape index: {}]
  %s3 = inlined_call_operand.vmem [shape: f32[36,36], index: 3, kind: input, shape index: {}]
  %s4 = inlined_call_operand.vmem [shape: f32[36,36], index: 4, kind: input, shape index: {}]
  %s5 = inlined_call_operand.vmem [shape: f32[8,128], index: 5, kind: input, shape index: {}]
  %s6 = inlined_call_operand.vmem [shape: bf16[128,128], index: 6, kind: input, shape index: {}]
  %s7 = inlined_call_operand.vmem [shape: f32[36,128], index: 7, kind: input, shape index: {}]
  %s8 = inlined_call_operand.vmem [shape: f32[128,10], index: 8, kind: input, shape index: {}]
  %s9 = inlined_call_operand.vmem [shape: f32[2,36], index: 9, kind: input, shape index: {}]
  %s10 = inlined_call_operand.hbm [shape: f32[1,2,10], index: 10, kind: output, shape index: {}]
  %s11 = sld [smem:[#allocation0]]
  $region50: #{a_call__.1} parent=0
    _
  %s13 = ssub.s32 1, %s11
  %s14 = scalar_select 0, %s13, %s11
  $region1: #{a_call__.1} parent=0
    #allocation2 [shape = 'u8[1024]{0}', space=vmem, size = 0x400, scoped, tag = 'output window, operand 0, single buffered']
    #allocation3 [shape = 's32[1]{0}', space=sflag, size = 0x4, scoped, tag = 'scoped memory for a_call__.1']
    %15 = vsyncpa [#allocation3], 0
    // Predicated region
    $region2: #{a_call__.1} parent=1 // pred_check
      _
    $region3: #{a_call__.1} parent=1 // pred_check_branch
      %17 = sbr.rel (0) target = $region5
    $region4: #{a_call__.1} parent=1 // pred_region
      _
    $region5: #{a_call__.1} parent=1 // pred_fallthru
      _
    // Predicated region
    $region6: #{a_call__.1} parent=1 // pred_check
      _
    $region7: #{a_call__.1} parent=1 // pred_check_branch
      %19 = sbr.rel (0) target = $region9
    $region8: #{a_call__.1} parent=1 // pred_region
      _
    $region9: #{a_call__.1} parent=1 // pred_fallthru
      _
    // Predicated region
    $region10: #{a_call__.1} parent=1 // pred_check
      _
    $region11: #{a_call__.1} parent=1 // pred_check_branch
      %21 = sbr.rel (0) target = $region13
    $region12: #{a_call__.1} parent=1 // pred_region
      _
    $region13: #{a_call__.1} parent=1 // pred_fallthru
      _
    // Predicated region
    $region14: #{a_call__.1} parent=1 // pred_check
      _
    $region15: #{a_call__.1} parent=1 // pred_check_branch
      %23 = sbr.rel (0) target = $region17
    $region16: #{a_call__.1} parent=1 // pred_region
      _
    $region17: #{a_call__.1} parent=1 // pred_fallthru
      _
    // Predicated region
    $region18: #{a_call__.1} parent=1 // pred_check
      _
    $region19: #{a_call__.1} parent=1 // pred_check_branch
      %25 = sbr.rel (0) target = $region21
    $region20: #{a_call__.1} parent=1 // pred_region
      _
    $region21: #{a_call__.1} parent=1 // pred_fallthru
      _
    // Predicated region
    $region22: #{a_call__.1} parent=1 // pred_check
      _
    $region23: #{a_call__.1} parent=1 // pred_check_branch
      %27 = sbr.rel (0) target = $region25
    $region24: #{a_call__.1} parent=1 // pred_region
      _
    $region25: #{a_call__.1} parent=1 // pred_fallthru
      _
    // Predicated region
    $region26: #{a_call__.1} parent=1 // pred_check
      _
    $region27: #{a_call__.1} parent=1 // pred_check_branch
      %29 = sbr.rel (0) target = $region29
    $region28: #{a_call__.1} parent=1 // pred_region
      _
    $region29: #{a_call__.1} parent=1 // pred_fallthru
      _
    // Predicated region
    $region30: #{a_call__.1} parent=1 // pred_check
      _
    $region31: #{a_call__.1} parent=1 // pred_check_branch
      %31 = sbr.rel (0) target = $region33
    $region32: #{a_call__.1} parent=1 // pred_region
      _
    $region33: #{a_call__.1} parent=1 // pred_fallthru
      _
    // Predicated region
    $region34: #{a_call__.1} parent=1 // pred_check
      _
    $region35: #{a_call__.1} parent=1 // pred_check_branch
      %33 = sbr.rel (0) target = $region37
    $region36: #{a_call__.1} parent=1 // pred_region
      _
    $region37: #{a_call__.1} parent=1 // pred_fallthru
      _
    // Predicated region
    $region38: #{a_call__.1} parent=1 // pred_check
      _
    $region39: #{a_call__.1} parent=1 // pred_check_branch
      %35 = sbr.rel (0) target = $region41
    $region40: #{a_call__.1} parent=1 // pred_region
      _
    $region41: #{a_call__.1} parent=1 // pred_fallthru
      _
    %v36 = vld [vmem:[%s0] sm:$0xff]
    %v37 = vld [vmem:[%s0 + $0x8] sm:$0xff]
    %v38 = vld [vmem:[%s0 + $0x10] sm:$0xff]
    %v39 = vld [vmem:[%s0 + $0x18] sm:$0xff]
    %v40 = vld [vmem:[%s0 + $0x20] sm:$0xf]
    %v41 = vld [vmem:[%s3] sm:$0xff]
    %v42 = vld [vmem:[%s3 + $0x8] sm:$0xff]
    %v43 = vld [vmem:[%s3 + $0x10] sm:$0xff]
    %v44 = vld [vmem:[%s3 + $0x18] sm:$0xff]
    %v45 = vld [vmem:[%s3 + $0x20] sm:$0xf]
    %v46 = vld [vmem:[%s4] sm:$0xff]
    %v47 = vld [vmem:[%s4 + $0x8] sm:$0xff]
    %v48 = vld [vmem:[%s4 + $0x10] sm:$0xff]
    %v49 = vld [vmem:[%s4 + $0x18] sm:$0xff]
    %v50 = vld [vmem:[%s4 + $0x20] sm:$0xf]
    %v51 = vld [vmem:[%s5] sm:$0xff]
    %vm52 = vcmask 293888
    %v54 = vsel %vm52, %v41, 0
    %v57 = vsel %vm52, %v42, 0
    %v60 = vsel %vm52, %v43, 0
    %v63 = vsel %vm52, %v44, 0
    %v66 = vsel %vm52, %v45, 0
    %vm68 = vcmask 1043456
    %v70 = vsel %vm68, %v40, 0
    %72 = vmatprep.subr.mxu0 0.0
    %73 = vmatpush1.msra.mxu0 %v36
    %74 = vmatprep.subr.mxu0 0.0
    %75 = vmatpush1.msra.mxu0 %v37
    %76 = vmatprep.subr.mxu0 0.0
    %77 = vmatpush1.msra.mxu0 %v38
    %78 = vmatprep.subr.mxu0 0.0
    %79 = vmatpush1.msra.mxu0 %v39
    %80 = vmatprep.subr.mxu0 0.0
    %81 = vmatpush1.msra.mxu0 %v70
    %82 = vmatprep.subr.mxu0 0.0
    %83 = vmatpush1.msra.mxu0 0.0
    %84 = vmatprep.subr.mxu0 0.0
    %85 = vmatpush1.msra.mxu0 0.0
    %86 = vmatprep.subr.mxu0 0.0
    %87 = vmatpush1.msra.mxu0 0.0
    %88 = vmatprep.subr.mxu0 0.0
    %89 = vmatpush1.msra.mxu0 0.0
    %90 = vmatprep.subr.mxu0 0.0
    %91 = vmatpush1.msra.mxu0 0.0
    %92 = vmatprep.subr.mxu0 0.0
    %93 = vmatpush1.msra.mxu0 0.0
    %94 = vmatprep.subr.mxu0 0.0
    %95 = vmatpush1.msra.mxu0 0.0
    %96 = vmatprep.subr.mxu0 0.0
    %97 = vmatpush1.msra.mxu0 0.0
    %98 = vmatprep.subr.mxu0 0.0
    %99 = vmatpush1.msra.mxu0 0.0
    %100 = vmatprep.subr.mxu0 0.0
    %101 = vmatpush1.msra.mxu0 0.0
    %102 = vmatprep.subr.mxu0 0.0
    %103 = vmatpush1.msra.mxu0 0.0
    %104 = vmatprep.subr.mxu0 0.0
    %105 = vmatpush1.msra.mxu0 0.0
    %106 = vmatprep.subr.mxu0 0.0
    %107 = vmatpush1.msra.mxu0 0.0
    %108 = vmatprep.subr.mxu0 0.0
    %109 = vmatpush1.msra.mxu0 0.0
    %110 = vmatprep.subr.mxu0 0.0
    %111 = vmatpush1.msra.mxu0 0.0
    %112 = vmatprep.subr.mxu0 0.0
    %113 = vmatpush1.msra.mxu0 0.0
    %114 = vmatprep.subr.mxu0 0.0
    %115 = vmatpush1.msra.mxu0 0.0
    %116 = vmatprep.subr.mxu0 0.0
    %117 = vmatpush1.msra.mxu0 0.0
    %118 = vmatprep.subr.mxu0 0.0
    %119 = vmatpush1.msra.mxu0 0.0
    %120 = vmatprep.subr.mxu0 0.0
    %121 = vmatpush1.msra.mxu0 0.0
    %122 = vmatprep.subr.mxu0 0.0
    %123 = vmatpush1.msra.mxu0 0.0
    %124 = vmatprep.subr.mxu0 0.0
    %125 = vmatpush1.msra.mxu0 0.0
    %126 = vmatprep.subr.mxu0 0.0
    %127 = vmatpush1.msra.mxu0 0.0
    %128 = vmatprep.subr.mxu0 0.0
    %129 = vmatpush1.msra.mxu0 0.0
    %130 = vmatprep.subr.mxu0 0.0
    %131 = vmatpush1.msra.mxu0 0.0
    %132 = vmatprep.subr.mxu0 0.0
    %133 = vmatpush1.msra.mxu0 0.0
    %134 = vmatprep.subr.mxu0 0.0
    %135 = vmatpush1.msra.mxu0 0.0
    %136 = vmatprep.mubr.f32.mxu0 0.0
    %137 = vmatmul.mubr.f32.gmra.mrb[0].mxu0 %v54
    %v138 = vpop.f32.mrb[0].mxu0
    %v139 = vadd.f32 0.0, %v138
    %v140 = vpop.f32.mrb[0].mxu0
    %141 = vmatprep.mubr.f32.mxu0 0.0
    %142 = vmatmul.mubr.f32.gmra.mrb[0].mxu0 %v57
    %v143 = vpop.f32.mrb[0].mxu0
    %v144 = vadd.f32 0.0, %v143
    %v145 = vpop.f32.mrb[0].mxu0
    %146 = vmatprep.mubr.f32.mxu0 0.0
    %147 = vmatmul.mubr.f32.gmra.mrb[0].mxu0 %v60
    %v148 = vpop.f32.mrb[0].mxu0
    %v149 = vadd.f32 0.0, %v148
    %v150 = vpop.f32.mrb[0].mxu0
    %151 = vmatprep.mubr.f32.mxu0 0.0
    %152 = vmatmul.mubr.f32.gmra.mrb[0].mxu0 %v63
    %v153 = vpop.f32.mrb[0].mxu0
    %v154 = vadd.f32 0.0, %v153
    %v155 = vpop.f32.mrb[0].mxu0
    %156 = vmatprep.mubr.f32.mxu0 0.0
    %157 = vmatmul.mubr.f32.gmra.mrb[0].mxu0 %v66
    %v158 = vpop.f32.mrb[0].mxu0
    %v159 = vadd.f32 0.0, %v158
    %v160 = vpop.f32.mrb[0].mxu0
    %161 = vdwg.mxu0
    %v163 = vsel %vm52, %v46, 0
    %v166 = vsel %vm52, %v47, 0
    %v169 = vsel %vm52, %v48, 0
    %v172 = vsel %vm52, %v49, 0
    %v175 = vsel %vm52, %v50, 0
    %177 = vmatprep.subr.mxu0 0.0
    %178 = vmatpush1.msra.mxu0 %v36
    %179 = vmatprep.subr.mxu0 0.0
    %180 = vmatpush1.msra.mxu0 %v37
    %181 = vmatprep.subr.mxu0 0.0
    %182 = vmatpush1.msra.mxu0 %v38
    %183 = vmatprep.subr.mxu0 0.0
    %184 = vmatpush1.msra.mxu0 %v39
    %185 = vmatprep.subr.mxu0 0.0
    %186 = vmatpush1.msra.mxu0 %v70
    %187 = vmatprep.subr.mxu0 0.0
    %188 = vmatpush1.msra.mxu0 0.0
    %189 = vmatprep.subr.mxu0 0.0
    %190 = vmatpush1.msra.mxu0 0.0
    %191 = vmatprep.subr.mxu0 0.0
    %192 = vmatpush1.msra.mxu0 0.0
    %193 = vmatprep.subr.mxu0 0.0
    %194 = vmatpush1.msra.mxu0 0.0
    %195 = vmatprep.subr.mxu0 0.0
    %196 = vmatpush1.msra.mxu0 0.0
    %197 = vmatprep.subr.mxu0 0.0
    %198 = vmatpush1.msra.mxu0 0.0
    %199 = vmatprep.subr.mxu0 0.0
    %200 = vmatpush1.msra.mxu0 0.0
    %201 = vmatprep.subr.mxu0 0.0
    %202 = vmatpush1.msra.mxu0 0.0
    %203 = vmatprep.subr.mxu0 0.0
    %204 = vmatpush1.msra.mxu0 0.0
    %205 = vmatprep.subr.mxu0 0.0
    %206 = vmatpush1.msra.mxu0 0.0
    %207 = vmatprep.subr.mxu0 0.0
    %208 = vmatpush1.msra.mxu0 0.0
    %209 = vmatprep.subr.mxu0 0.0
    %210 = vmatpush1.msra.mxu0 0.0
    %211 = vmatprep.subr.mxu0 0.0
    %212 = vmatpush1.msra.mxu0 0.0
    %213 = vmatprep.subr.mxu0 0.0
    %214 = vmatpush1.msra.mxu0 0.0
    %215 = vmatprep.subr.mxu0 0.0
    %216 = vmatpush1.msra.mxu0 0.0
    %217 = vmatprep.subr.mxu0 0.0
    %218 = vmatpush1.msra.mxu0 0.0
    %219 = vmatprep.subr.mxu0 0.0
    %220 = vmatpush1.msra.mxu0 0.0
    %221 = vmatprep.subr.mxu0 0.0
    %222 = vmatpush1.msra.mxu0 0.0
    %223 = vmatprep.subr.mxu0 0.0
    %224 = vmatpush1.msra.mxu0 0.0
    %225 = vmatprep.subr.mxu0 0.0
    %226 = vmatpush1.msra.mxu0 0.0
    %227 = vmatprep.subr.mxu0 0.0
    %228 = vmatpush1.msra.mxu0 0.0
    %229 = vmatprep.subr.mxu0 0.0
    %230 = vmatpush1.msra.mxu0 0.0
    %231 = vmatprep.subr.mxu0 0.0
    %232 = vmatpush1.msra.mxu0 0.0
    %233 = vmatprep.subr.mxu0 0.0
    %234 = vmatpush1.msra.mxu0 0.0
    %235 = vmatprep.subr.mxu0 0.0
    %236 = vmatpush1.msra.mxu0 0.0
    %237 = vmatprep.subr.mxu0 0.0
    %238 = vmatpush1.msra.mxu0 0.0
    %239 = vmatprep.subr.mxu0 0.0
    %240 = vmatpush1.msra.mxu0 0.0
    %241 = vmatprep.mubr.f32.mxu0 0.0
    %242 = vmatmul.mubr.f32.gmra.mrb[0].mxu0 %v163
    %v243 = vpop.f32.mrb[0].mxu0
    %v244 = vadd.f32 0.0, %v243
    %v245 = vpop.f32.mrb[0].mxu0
    %246 = vmatprep.mubr.f32.mxu0 0.0
    %247 = vmatmul.mubr.f32.gmra.mrb[0].mxu0 %v166
    %v248 = vpop.f32.mrb[0].mxu0
    %v249 = vadd.f32 0.0, %v248
    %v250 = vpop.f32.mrb[0].mxu0
    %251 = vmatprep.mubr.f32.mxu0 0.0
    %252 = vmatmul.mubr.f32.gmra.mrb[0].mxu0 %v169
    %v253 = vpop.f32.mrb[0].mxu0
    %v254 = vadd.f32 0.0, %v253
    %v255 = vpop.f32.mrb[0].mxu0
    %256 = vmatprep.mubr.f32.mxu0 0.0
    %257 = vmatmul.mubr.f32.gmra.mrb[0].mxu0 %v172
    %v258 = vpop.f32.mrb[0].mxu0
    %v259 = vadd.f32 0.0, %v258
    %v260 = vpop.f32.mrb[0].mxu0
    %261 = vmatprep.mubr.f32.mxu0 0.0
    %262 = vmatmul.mubr.f32.gmra.mrb[0].mxu0 %v175
    %v263 = vpop.f32.mrb[0].mxu0
    %v264 = vadd.f32 0.0, %v263
    %v265 = vpop.f32.mrb[0].mxu0
    %266 = vdwg.mxu0
    %v267 = vld [vmem:[%s1] sm:$0xf]
    %v268 = vld [vmem:[%s1 + $0x4] sm:$0xf]
    %v269 = vld [vmem:[%s1 + $0x8] sm:$0xf]
    %v270 = vld [vmem:[%s1 + $0xc] sm:$0xf]
    %v271 = vld [vmem:[%s1 + $0x10] sm:$0xf]
    %v272 = vld [vmem:[%s1 + $0x14] sm:$0xf]
    %v273 = vld [vmem:[%s1 + $0x18] sm:$0xf]
    %v274 = vld [vmem:[%s1 + $0x1c] sm:$0xf]
    %v275 = vunpack.c.l.bf16 %v267
    %v276 = vunpack.c.l.bf16 %v268
    %v277 = vunpack.c.l.bf16 %v269
    %v278 = vunpack.c.l.bf16 %v270
    %v279 = vunpack.c.l.bf16 %v271
    %v280 = vunpack.c.l.bf16 %v272
    %v281 = vunpack.c.l.bf16 %v273
    %v282 = vunpack.c.l.bf16 %v274
    %s283 = scalar_lea.vmem %s1, 32
    %v284 = vld [vmem:[%s283] sm:$0xf]
    %v285 = vld [vmem:[%s283 + $0x4] sm:$0xf]
    %v286 = vld [vmem:[%s283 + $0x8] sm:$0xf]
    %v287 = vld [vmem:[%s283 + $0xc] sm:$0xf]
    %v288 = vld [vmem:[%s283 + $0x10] sm:$0xf]
    %v289 = vld [vmem:[%s283 + $0x14] sm:$0xf]
    %v290 = vld [vmem:[%s283 + $0x18] sm:$0xf]
    %v291 = vld [vmem:[%s283 + $0x1c] sm:$0xf]
    %v292 = vunpack.c.l.bf16 %v284
    %v293 = vunpack.c.l.bf16 %v285
    %v294 = vunpack.c.l.bf16 %v286
    %v295 = vunpack.c.l.bf16 %v287
    %v296 = vunpack.c.l.bf16 %v288
    %v297 = vunpack.c.l.bf16 %v289
    %v298 = vunpack.c.l.bf16 %v290
    %v299 = vunpack.c.l.bf16 %v291
    %vm300 = vcmask 523264
    %v302 = vsel %vm300, %v36, 0
    %v305 = vsel %vm300, %v37, 0
    %v308 = vsel %vm300, %v38, 0
    %v311 = vsel %vm300, %v39, 0
    %v313 = vsel %vm300, %v40, 0
    %315 = vmatprep.subr.mxu0 0.0
    %316 = vmatpush1.msra.mxu0 %v292
    %317 = vmatprep.subr.mxu0 0.0
    %318 = vmatpush1.msra.mxu0 %v293
    %319 = vmatprep.subr.mxu0 0.0
    %320 = vmatpush1.msra.mxu0 %v294
    %321 = vmatprep.subr.mxu0 0.0
    %322 = vmatpush1.msra.mxu0 %v295
    %323 = vmatprep.subr.mxu0 0.0
    %324 = vmatpush1.msra.mxu0 %v296
    %325 = vmatprep.subr.mxu0 0.0
    %326 = vmatpush1.msra.mxu0 %v297
    %327 = vmatprep.subr.mxu0 0.0
    %328 = vmatpush1.msra.mxu0 %v298
    %329 = vmatprep.subr.mxu0 0.0
    %330 = vmatpush1.msra.mxu0 %v299
    %331 = vmatprep.subr.mxu0 0.0
    %332 = vmatpush1.msra.mxu0 0.0
    %333 = vmatprep.subr.mxu0 0.0
    %334 = vmatpush1.msra.mxu0 0.0
    %335 = vmatprep.subr.mxu0 0.0
    %336 = vmatpush1.msra.mxu0 0.0
    %337 = vmatprep.subr.mxu0 0.0
    %338 = vmatpush1.msra.mxu0 0.0
    %339 = vmatprep.subr.mxu0 0.0
    %340 = vmatpush1.msra.mxu0 0.0
    %341 = vmatprep.subr.mxu0 0.0
    %342 = vmatpush1.msra.mxu0 0.0
    %343 = vmatprep.subr.mxu0 0.0
    %344 = vmatpush1.msra.mxu0 0.0
    %345 = vmatprep.subr.mxu0 0.0
    %346 = vmatpush1.msra.mxu0 0.0
    %347 = vmatprep.subr.mxu0 0.0
    %348 = vmatpush1.msra.mxu0 0.0
    %349 = vmatprep.subr.mxu0 0.0
    %350 = vmatpush1.msra.mxu0 0.0
    %351 = vmatprep.subr.mxu0 0.0
    %352 = vmatpush1.msra.mxu0 0.0
    %353 = vmatprep.subr.mxu0 0.0
    %354 = vmatpush1.msra.mxu0 0.0
    %355 = vmatprep.subr.mxu0 0.0
    %356 = vmatpush1.msra.mxu0 0.0
    %357 = vmatprep.subr.mxu0 0.0
    %358 = vmatpush1.msra.mxu0 0.0
    %359 = vmatprep.subr.mxu0 0.0
    %360 = vmatpush1.msra.mxu0 0.0
    %361 = vmatprep.subr.mxu0 0.0
    %362 = vmatpush1.msra.mxu0 0.0
    %363 = vmatprep.subr.mxu0 0.0
    %364 = vmatpush1.msra.mxu0 0.0
    %365 = vmatprep.subr.mxu0 0.0
    %366 = vmatpush1.msra.mxu0 0.0
    %367 = vmatprep.subr.mxu0 0.0
    %368 = vmatpush1.msra.mxu0 0.0
    %369 = vmatprep.subr.mxu0 0.0
    %370 = vmatpush1.msra.mxu0 0.0
    %371 = vmatprep.subr.mxu0 0.0
    %372 = vmatpush1.msra.mxu0 0.0
    %373 = vmatprep.subr.mxu0 0.0
    %374 = vmatpush1.msra.mxu0 0.0
    %375 = vmatprep.subr.mxu0 0.0
    %376 = vmatpush1.msra.mxu0 0.0
    %377 = vmatprep.subr.mxu0 0.0
    %378 = vmatpush1.msra.mxu0 0.0
    %379 = vmatprep.mubr.f32.mxu0 0.0
    %380 = vmatmul.mubr.f32.gmra.mrb[0].mxu0 %v302
    %v381 = vpop.f32.mrb[0].mxu0
    %v382 = vadd.f32 0.0, %v381
    %v383 = vpop.f32.mrb[0].mxu0
    %384 = vmatprep.mubr.f32.mxu0 0.0
    %385 = vmatmul.mubr.f32.gmra.mrb[0].mxu0 %v305
    %v386 = vpop.f32.mrb[0].mxu0
    %v387 = vadd.f32 0.0, %v386
    %v388 = vpop.f32.mrb[0].mxu0
    %389 = vmatprep.mubr.f32.mxu0 0.0
    %390 = vmatmul.mubr.f32.gmra.mrb[0].mxu0 %v308
    %v391 = vpop.f32.mrb[0].mxu0
    %v392 = vadd.f32 0.0, %v391
    %v393 = vpop.f32.mrb[0].mxu0
    %394 = vmatprep.mubr.f32.mxu0 0.0
    %395 = vmatmul.mubr.f32.gmra.mrb[0].mxu0 %v311
    %v396 = vpop.f32.mrb[0].mxu0
    %v397 = vadd.f32 0.0, %v396
    %v398 = vpop.f32.mrb[0].mxu0
    %399 = vmatprep.mubr.f32.mxu0 0.0
    %400 = vmatmul.mubr.f32.gmra.mrb[0].mxu0 %v313
    %v401 = vpop.f32.mrb[0].mxu0
    %v402 = vadd.f32 0.0, %v401
    %v403 = vpop.f32.mrb[0].mxu0
    %404 = vdwg.mxu0
    %v406 = vsel %vm300, %v139, 0
    %v409 = vsel %vm300, %v144, 0
    %v412 = vsel %vm300, %v149, 0
    %v415 = vsel %vm300, %v154, 0
    %v418 = vsel %vm300, %v159, 0
    %420 = vmatprep.subr.mxu0 0.0
    %421 = vmatpush1.msra.mxu0 %v275
    %422 = vmatprep.subr.mxu0 0.0
    %423 = vmatpush1.msra.mxu0 %v276
    %424 = vmatprep.subr.mxu0 0.0
    %425 = vmatpush1.msra.mxu0 %v277
    %426 = vmatprep.subr.mxu0 0.0
    %427 = vmatpush1.msra.mxu0 %v278
    %428 = vmatprep.subr.mxu0 0.0
    %429 = vmatpush1.msra.mxu0 %v279
    %430 = vmatprep.subr.mxu0 0.0
    %431 = vmatpush1.msra.mxu0 %v280
    %432 = vmatprep.subr.mxu0 0.0
    %433 = vmatpush1.msra.mxu0 %v281
    %434 = vmatprep.subr.mxu0 0.0
    %435 = vmatpush1.msra.mxu0 %v282
    %436 = vmatprep.subr.mxu0 0.0
    %437 = vmatpush1.msra.mxu0 0.0
    %438 = vmatprep.subr.mxu0 0.0
    %439 = vmatpush1.msra.mxu0 0.0
    %440 = vmatprep.subr.mxu0 0.0
    %441 = vmatpush1.msra.mxu0 0.0
    %442 = vmatprep.subr.mxu0 0.0
    %443 = vmatpush1.msra.mxu0 0.0
    %444 = vmatprep.subr.mxu0 0.0
    %445 = vmatpush1.msra.mxu0 0.0
    %446 = vmatprep.subr.mxu0 0.0
    %447 = vmatpush1.msra.mxu0 0.0
    %448 = vmatprep.subr.mxu0 0.0
    %449 = vmatpush1.msra.mxu0 0.0
    %450 = vmatprep.subr.mxu0 0.0
    %451 = vmatpush1.msra.mxu0 0.0
    %452 = vmatprep.subr.mxu0 0.0
    %453 = vmatpush1.msra.mxu0 0.0
    %454 = vmatprep.subr.mxu0 0.0
    %455 = vmatpush1.msra.mxu0 0.0
    %456 = vmatprep.subr.mxu0 0.0
    %457 = vmatpush1.msra.mxu0 0.0
    %458 = vmatprep.subr.mxu0 0.0
    %459 = vmatpush1.msra.mxu0 0.0
    %460 = vmatprep.subr.mxu0 0.0
    %461 = vmatpush1.msra.mxu0 0.0
    %462 = vmatprep.subr.mxu0 0.0
    %463 = vmatpush1.msra.mxu0 0.0
    %464 = vmatprep.subr.mxu0 0.0
    %465 = vmatpush1.msra.mxu0 0.0
    %466 = vmatprep.subr.mxu0 0.0
    %467 = vmatpush1.msra.mxu0 0.0
    %468 = vmatprep.subr.mxu0 0.0
    %469 = vmatpush1.msra.mxu0 0.0
    %470 = vmatprep.subr.mxu0 0.0
    %471 = vmatpush1.msra.mxu0 0.0
    %472 = vmatprep.subr.mxu0 0.0
    %473 = vmatpush1.msra.mxu0 0.0
    %474 = vmatprep.subr.mxu0 0.0
    %475 = vmatpush1.msra.mxu0 0.0
    %476 = vmatprep.subr.mxu0 0.0
    %477 = vmatpush1.msra.mxu0 0.0
    %478 = vmatprep.subr.mxu0 0.0
    %479 = vmatpush1.msra.mxu0 0.0
    %480 = vmatprep.subr.mxu0 0.0
    %481 = vmatpush1.msra.mxu0 0.0
    %482 = vmatprep.subr.mxu0 0.0
    %483 = vmatpush1.msra.mxu0 0.0
    %484 = vmatprep.mubr.f32.mxu0 0.0
    %485 = vmatmul.mubr.f32.gmra.mrb[0].mxu0 %v406
    %v486 = vpop.f32.mrb[0].mxu0
    %v487 = vadd.f32 %v382, %v486
    %v488 = vpop.f32.mrb[0].mxu0
    %489 = vmatprep.mubr.f32.mxu0 0.0
    %490 = vmatmul.mubr.f32.gmra.mrb[0].mxu0 %v409
    %v491 = vpop.f32.mrb[0].mxu0
    %v492 = vadd.f32 %v387, %v491
    %v493 = vpop.f32.mrb[0].mxu0
    %494 = vmatprep.mubr.f32.mxu0 0.0
    %495 = vmatmul.mubr.f32.gmra.mrb[0].mxu0 %v412
    %v496 = vpop.f32.mrb[0].mxu0
    %v497 = vadd.f32 %v392, %v496
    %v498 = vpop.f32.mrb[0].mxu0
    %499 = vmatprep.mubr.f32.mxu0 0.0
    %500 = vmatmul.mubr.f32.gmra.mrb[0].mxu0 %v415
    %v501 = vpop.f32.mrb[0].mxu0
    %v502 = vadd.f32 %v397, %v501
    %v503 = vpop.f32.mrb[0].mxu0
    %504 = vmatprep.mubr.f32.mxu0 0.0
    %505 = vmatmul.mubr.f32.gmra.mrb[0].mxu0 %v418
    %v506 = vpop.f32.mrb[0].mxu0
    %v507 = vadd.f32 %v402, %v506
    %v508 = vpop.f32.mrb[0].mxu0
    %509 = vdwg.mxu0
    %s510 = scalar_lea.vmem %s1, 64
    %v511 = vld [vmem:[%s510] sm:$0xf]
    %v512 = vld [vmem:[%s510 + $0x4] sm:$0xf]
    %v513 = vld [vmem:[%s510 + $0x8] sm:$0xf]
    %v514 = vld [vmem:[%s510 + $0xc] sm:$0xf]
    %v515 = vld [vmem:[%s510 + $0x10] sm:$0xf]
    %v516 = vld [vmem:[%s510 + $0x14] sm:$0xf]
    %v517 = vld [vmem:[%s510 + $0x18] sm:$0xf]
    %v518 = vld [vmem:[%s510 + $0x1c] sm:$0xf]
    %v519 = vunpack.c.l.bf16 %v511
    %v520 = vunpack.c.l.bf16 %v512
    %v521 = vunpack.c.l.bf16 %v513
    %v522 = vunpack.c.l.bf16 %v514
    %v523 = vunpack.c.l.bf16 %v515
    %v524 = vunpack.c.l.bf16 %v516
    %v525 = vunpack.c.l.bf16 %v517
    %v526 = vunpack.c.l.bf16 %v518
    %v528 = vsel %vm300, %v244, 0
    %v531 = vsel %vm300, %v249, 0
    %v534 = vsel %vm300, %v254, 0
    %v537 = vsel %vm300, %v259, 0
    %v540 = vsel %vm300, %v264, 0
    %542 = vmatprep.subr.mxu0 0.0
    %543 = vmatpush1.msra.mxu0 %v519
    %544 = vmatprep.subr.mxu0 0.0
    %545 = vmatpush1.msra.mxu0 %v520
    %546 = vmatprep.subr.mxu0 0.0
    %547 = vmatpush1.msra.mxu0 %v521
    %548 = vmatprep.subr.mxu0 0.0
    %549 = vmatpush1.msra.mxu0 %v522
    %550 = vmatprep.subr.mxu0 0.0
    %551 = vmatpush1.msra.mxu0 %v523
    %552 = vmatprep.subr.mxu0 0.0
    %553 = vmatpush1.msra.mxu0 %v524
    %554 = vmatprep.subr.mxu0 0.0
    %555 = vmatpush1.msra.mxu0 %v525
    %556 = vmatprep.subr.mxu0 0.0
    %557 = vmatpush1.msra.mxu0 %v526
    %558 = vmatprep.subr.mxu0 0.0
    %559 = vmatpush1.msra.mxu0 0.0
    %560 = vmatprep.subr.mxu0 0.0
    %561 = vmatpush1.msra.mxu0 0.0
    %562 = vmatprep.subr.mxu0 0.0
    %563 = vmatpush1.msra.mxu0 0.0
    %564 = vmatprep.subr.mxu0 0.0
    %565 = vmatpush1.msra.mxu0 0.0
    %566 = vmatprep.subr.mxu0 0.0
    %567 = vmatpush1.msra.mxu0 0.0
    %568 = vmatprep.subr.mxu0 0.0
    %569 = vmatpush1.msra.mxu0 0.0
    %570 = vmatprep.subr.mxu0 0.0
    %571 = vmatpush1.msra.mxu0 0.0
    %572 = vmatprep.subr.mxu0 0.0
    %573 = vmatpush1.msra.mxu0 0.0
    %574 = vmatprep.subr.mxu0 0.0
    %575 = vmatpush1.msra.mxu0 0.0
    %576 = vmatprep.subr.mxu0 0.0
    %577 = vmatpush1.msra.mxu0 0.0
    %578 = vmatprep.subr.mxu0 0.0
    %579 = vmatpush1.msra.mxu0 0.0
    %580 = vmatprep.subr.mxu0 0.0
    %581 = vmatpush1.msra.mxu0 0.0
    %582 = vmatprep.subr.mxu0 0.0
    %583 = vmatpush1.msra.mxu0 0.0
    %584 = vmatprep.subr.mxu0 0.0
    %585 = vmatpush1.msra.mxu0 0.0
    %586 = vmatprep.subr.mxu0 0.0
    %587 = vmatpush1.msra.mxu0 0.0
    %588 = vmatprep.subr.mxu0 0.0
    %589 = vmatpush1.msra.mxu0 0.0
    %590 = vmatprep.subr.mxu0 0.0
    %591 = vmatpush1.msra.mxu0 0.0
    %592 = vmatprep.subr.mxu0 0.0
    %593 = vmatpush1.msra.mxu0 0.0
    %594 = vmatprep.subr.mxu0 0.0
    %595 = vmatpush1.msra.mxu0 0.0
    %596 = vmatprep.subr.mxu0 0.0
    %597 = vmatpush1.msra.mxu0 0.0
    %598 = vmatprep.subr.mxu0 0.0
    %599 = vmatpush1.msra.mxu0 0.0
    %600 = vmatprep.subr.mxu0 0.0
    %601 = vmatpush1.msra.mxu0 0.0
    %602 = vmatprep.subr.mxu0 0.0
    %603 = vmatpush1.msra.mxu0 0.0
    %604 = vmatprep.subr.mxu0 0.0
    %605 = vmatpush1.msra.mxu0 0.0
    %606 = vmatprep.mubr.f32.mxu0 0.0
    %607 = vmatmul.mubr.f32.gmra.mrb[0].mxu0 %v528
    %v608 = vpop.f32.mrb[0].mxu0
    %v609 = vadd.f32 0.0, %v608
    %v610 = vpop.f32.mrb[0].mxu0
    %611 = vmatprep.mubr.f32.mxu0 0.0
    %612 = vmatmul.mubr.f32.gmra.mrb[0].mxu0 %v531
    %v613 = vpop.f32.mrb[0].mxu0
    %v614 = vadd.f32 0.0, %v613
    %v615 = vpop.f32.mrb[0].mxu0
    %616 = vmatprep.mubr.f32.mxu0 0.0
    %617 = vmatmul.mubr.f32.gmra.mrb[0].mxu0 %v534
    %v618 = vpop.f32.mrb[0].mxu0
    %v619 = vadd.f32 0.0, %v618
    %v620 = vpop.f32.mrb[0].mxu0
    %621 = vmatprep.mubr.f32.mxu0 0.0
    %622 = vmatmul.mubr.f32.gmra.mrb[0].mxu0 %v537
    %v623 = vpop.f32.mrb[0].mxu0
    %v624 = vadd.f32 0.0, %v623
    %v625 = vpop.f32.mrb[0].mxu0
    %626 = vmatprep.mubr.f32.mxu0 0.0
    %627 = vmatmul.mubr.f32.gmra.mrb[0].mxu0 %v540
    %v628 = vpop.f32.mrb[0].mxu0
    %v629 = vadd.f32 0.0, %v628
    %v630 = vpop.f32.mrb[0].mxu0
    %631 = vdwg.mxu0
    %v632 = vadd.f32 %v487, %v609
    %v633 = vadd.f32 %v492, %v614
    %v634 = vadd.f32 %v497, %v619
    %v635 = vadd.f32 %v502, %v624
    %v636 = vadd.f32 %v507, %v629
    %v637 = vlaneseq
    %v638 = vshrl.u32 %v637, 7
    %v639 = vsub.s32 0, %v638
    %v640 = vrot.slane %v51, %v639
    %v641 = vmul.f32 %v632, %v640
    %v642 = vmul.f32 %v633, %v640
    %v643 = vmul.f32 %v634, %v640
    %v644 = vmul.f32 %v635, %v640
    %v645 = vmul.f32 %v636, %v640
    %v646 = vlaneseq
    %v647 = vshrl.u32 %v646, 7
    %v648 = vsub.s32 1, %v647
    %v649 = vrot.slane %v51, %v648
    %v650 = vadd.f32 %v641, %v649
    %v651 = vadd.f32 %v642, %v649
    %v652 = vadd.f32 %v643, %v649
    %v653 = vadd.f32 %v644, %v649
    %v654 = vadd.f32 %v645, %v649
    %v655 = vmax.f32 %v650, 0.0
    %v656 = vmax.f32 %v651, 0.0
    %v657 = vmax.f32 %v652, 0.0
    %v658 = vmax.f32 %v653, 0.0
    %v659 = vmax.f32 %v654, 0.0
    %v661 = vsel %vm68, %v659, 0
    %663 = vmatprep.subr.mxu0 0.0
    %664 = vmatpush1.msra.mxu0 %v655
    %665 = vmatprep.subr.mxu0 0.0
    %666 = vmatpush1.msra.mxu0 %v656
    %667 = vmatprep.subr.mxu0 0.0
    %668 = vmatpush1.msra.mxu0 %v657
    %669 = vmatprep.subr.mxu0 0.0
    %670 = vmatpush1.msra.mxu0 %v658
    %671 = vmatprep.subr.mxu0 0.0
    %672 = vmatpush1.msra.mxu0 %v661
    %673 = vmatprep.subr.mxu0 0.0
    %674 = vmatpush1.msra.mxu0 0.0
    %675 = vmatprep.subr.mxu0 0.0
    %676 = vmatpush1.msra.mxu0 0.0
    %677 = vmatprep.subr.mxu0 0.0
    %678 = vmatpush1.msra.mxu0 0.0
    %679 = vmatprep.subr.mxu0 0.0
    %680 = vmatpush1.msra.mxu0 0.0
    %681 = vmatprep.subr.mxu0 0.0
    %682 = vmatpush1.msra.mxu0 0.0
    %683 = vmatprep.subr.mxu0 0.0
    %684 = vmatpush1.msra.mxu0 0.0
    %685 = vmatprep.subr.mxu0 0.0
    %686 = vmatpush1.msra.mxu0 0.0
    %687 = vmatprep.subr.mxu0 0.0
    %688 = vmatpush1.msra.mxu0 0.0
    %689 = vmatprep.subr.mxu0 0.0
    %690 = vmatpush1.msra.mxu0 0.0
    %691 = vmatprep.subr.mxu0 0.0
    %692 = vmatpush1.msra.mxu0 0.0
    %693 = vmatprep.subr.mxu0 0.0
    %694 = vmatpush1.msra.mxu0 0.0
    %695 = vmatprep.subr.mxu0 0.0
    %696 = vmatpush1.msra.mxu0 0.0
    %697 = vmatprep.subr.mxu0 0.0
    %698 = vmatpush1.msra.mxu0 0.0
    %699 = vmatprep.subr.mxu0 0.0
    %700 = vmatpush1.msra.mxu0 0.0
    %701 = vmatprep.subr.mxu0 0.0
    %702 = vmatpush1.msra.mxu0 0.0
    %703 = vmatprep.subr.mxu0 0.0
    %704 = vmatpush1.msra.mxu0 0.0
    %705 = vmatprep.subr.mxu0 0.0
    %706 = vmatpush1.msra.mxu0 0.0
    %707 = vmatprep.subr.mxu0 0.0
    %708 = vmatpush1.msra.mxu0 0.0
    %709 = vmatprep.subr.mxu0 0.0
    %710 = vmatpush1.msra.mxu0 0.0
    %711 = vmatprep.subr.mxu0 0.0
    %712 = vmatpush1.msra.mxu0 0.0
    %713 = vmatprep.subr.mxu0 0.0
    %714 = vmatpush1.msra.mxu0 0.0
    %715 = vmatprep.subr.mxu0 0.0
    %716 = vmatpush1.msra.mxu0 0.0
    %717 = vmatprep.subr.mxu0 0.0
    %718 = vmatpush1.msra.mxu0 0.0
    %719 = vmatprep.subr.mxu0 0.0
    %720 = vmatpush1.msra.mxu0 0.0
    %721 = vmatprep.subr.mxu0 0.0
    %722 = vmatpush1.msra.mxu0 0.0
    %723 = vmatprep.subr.mxu0 0.0
    %724 = vmatpush1.msra.mxu0 0.0
    %725 = vmatprep.subr.mxu0 0.0
    %726 = vmatpush1.msra.mxu0 0.0
    %727 = vmatprep.mubr.f32.mxu0 0.0
    %728 = vmatmul.mubr.f32.gmra.mrb[0].mxu0 %v54
    %v729 = vpop.f32.mrb[0].mxu0
    %v730 = vadd.f32 0.0, %v729
    %v731 = vpop.f32.mrb[0].mxu0
    %732 = vmatprep.mubr.f32.mxu0 0.0
    %733 = vmatmul.mubr.f32.gmra.mrb[0].mxu0 %v57
    %v734 = vpop.f32.mrb[0].mxu0
    %v735 = vadd.f32 0.0, %v734
    %v736 = vpop.f32.mrb[0].mxu0
    %737 = vmatprep.mubr.f32.mxu0 0.0
    %738 = vmatmul.mubr.f32.gmra.mrb[0].mxu0 %v60
    %v739 = vpop.f32.mrb[0].mxu0
    %v740 = vadd.f32 0.0, %v739
    %v741 = vpop.f32.mrb[0].mxu0
    %742 = vmatprep.mubr.f32.mxu0 0.0
    %743 = vmatmul.mubr.f32.gmra.mrb[0].mxu0 %v63
    %v744 = vpop.f32.mrb[0].mxu0
    %v745 = vadd.f32 0.0, %v744
    %v746 = vpop.f32.mrb[0].mxu0
    %747 = vmatprep.mubr.f32.mxu0 0.0
    %748 = vmatmul.mubr.f32.gmra.mrb[0].mxu0 %v66
    %v749 = vpop.f32.mrb[0].mxu0
    %v750 = vadd.f32 0.0, %v749
    %v751 = vpop.f32.mrb[0].mxu0
    %752 = vdwg.mxu0
    %753 = vmatprep.subr.mxu0 0.0
    %754 = vmatpush1.msra.mxu0 %v655
    %755 = vmatprep.subr.mxu0 0.0
    %756 = vmatpush1.msra.mxu0 %v656
    %757 = vmatprep.subr.mxu0 0.0
    %758 = vmatpush1.msra.mxu0 %v657
    %759 = vmatprep.subr.mxu0 0.0
    %760 = vmatpush1.msra.mxu0 %v658
    %761 = vmatprep.subr.mxu0 0.0
    %762 = vmatpush1.msra.mxu0 %v661
    %763 = vmatprep.subr.mxu0 0.0
    %764 = vmatpush1.msra.mxu0 0.0
    %765 = vmatprep.subr.mxu0 0.0
    %766 = vmatpush1.msra.mxu0 0.0
    %767 = vmatprep.subr.mxu0 0.0
    %768 = vmatpush1.msra.mxu0 0.0
    %769 = vmatprep.subr.mxu0 0.0
    %770 = vmatpush1.msra.mxu0 0.0
    %771 = vmatprep.subr.mxu0 0.0
    %772 = vmatpush1.msra.mxu0 0.0
    %773 = vmatprep.subr.mxu0 0.0
    %774 = vmatpush1.msra.mxu0 0.0
    %775 = vmatprep.subr.mxu0 0.0
    %776 = vmatpush1.msra.mxu0 0.0
    %777 = vmatprep.subr.mxu0 0.0
    %778 = vmatpush1.msra.mxu0 0.0
    %779 = vmatprep.subr.mxu0 0.0
    %780 = vmatpush1.msra.mxu0 0.0
    %781 = vmatprep.subr.mxu0 0.0
    %782 = vmatpush1.msra.mxu0 0.0
    %783 = vmatprep.subr.mxu0 0.0
    %784 = vmatpush1.msra.mxu0 0.0
    %785 = vmatprep.subr.mxu0 0.0
    %786 = vmatpush1.msra.mxu0 0.0
    %787 = vmatprep.subr.mxu0 0.0
    %788 = vmatpush1.msra.mxu0 0.0
    %789 = vmatprep.subr.mxu0 0.0
    %790 = vmatpush1.msra.mxu0 0.0
    %791 = vmatprep.subr.mxu0 0.0
    %792 = vmatpush1.msra.mxu0 0.0
    %793 = vmatprep.subr.mxu0 0.0
    %794 = vmatpush1.msra.mxu0 0.0
    %795 = vmatprep.subr.mxu0 0.0
    %796 = vmatpush1.msra.mxu0 0.0
    %797 = vmatprep.subr.mxu0 0.0
    %798 = vmatpush1.msra.mxu0 0.0
    %799 = vmatprep.subr.mxu0 0.0
    %800 = vmatpush1.msra.mxu0 0.0
    %801 = vmatprep.subr.mxu0 0.0
    %802 = vmatpush1.msra.mxu0 0.0
    %803 = vmatprep.subr.mxu0 0.0
    %804 = vmatpush1.msra.mxu0 0.0
    %805 = vmatprep.subr.mxu0 0.0
    %806 = vmatpush1.msra.mxu0 0.0
    %807 = vmatprep.subr.mxu0 0.0
    %808 = vmatpush1.msra.mxu0 0.0
    %809 = vmatprep.subr.mxu0 0.0
    %810 = vmatpush1.msra.mxu0 0.0
    %811 = vmatprep.subr.mxu0 0.0
    %812 = vmatpush1.msra.mxu0 0.0
    %813 = vmatprep.subr.mxu0 0.0
    %814 = vmatpush1.msra.mxu0 0.0
    %815 = vmatprep.subr.mxu0 0.0
    %816 = vmatpush1.msra.mxu0 0.0
    %817 = vmatprep.mubr.f32.mxu0 0.0
    %818 = vmatmul.mubr.f32.gmra.mrb[0].mxu0 %v163
    %v819 = vpop.f32.mrb[0].mxu0
    %v820 = vadd.f32 0.0, %v819
    %v821 = vpop.f32.mrb[0].mxu0
    %822 = vmatprep.mubr.f32.mxu0 0.0
    %823 = vmatmul.mubr.f32.gmra.mrb[0].mxu0 %v166
    %v824 = vpop.f32.mrb[0].mxu0
    %v825 = vadd.f32 0.0, %v824
    %v826 = vpop.f32.mrb[0].mxu0
    %827 = vmatprep.mubr.f32.mxu0 0.0
    %828 = vmatmul.mubr.f32.gmra.mrb[0].mxu0 %v169
    %v829 = vpop.f32.mrb[0].mxu0
    %v830 = vadd.f32 0.0, %v829
    %v831 = vpop.f32.mrb[0].mxu0
    %832 = vmatprep.mubr.f32.mxu0 0.0
    %833 = vmatmul.mubr.f32.gmra.mrb[0].mxu0 %v172
    %v834 = vpop.f32.mrb[0].mxu0
    %v835 = vadd.f32 0.0, %v834
    %v836 = vpop.f32.mrb[0].mxu0
    %837 = vmatprep.mubr.f32.mxu0 0.0
    %838 = vmatmul.mubr.f32.gmra.mrb[0].mxu0 %v175
    %v839 = vpop.f32.mrb[0].mxu0
    %v840 = vadd.f32 0.0, %v839
    %v841 = vpop.f32.mrb[0].mxu0
    %842 = vdwg.mxu0
    %v843 = vld [vmem:[%s2] sm:$0xf]
    %v844 = vld [vmem:[%s2 + $0x4] sm:$0xf]
    %v845 = vld [vmem:[%s2 + $0x8] sm:$0xf]
    %v846 = vld [vmem:[%s2 + $0xc] sm:$0xf]
    %v847 = vld [vmem:[%s2 + $0x10] sm:$0xf]
    %v848 = vld [vmem:[%s2 + $0x14] sm:$0xf]
    %v849 = vld [vmem:[%s2 + $0x18] sm:$0xf]
    %v850 = vld [vmem:[%s2 + $0x1c] sm:$0xf]
    %v851 = vld [vmem:[%s2 + $0x20] sm:$0xf]
    %v852 = vld [vmem:[%s2 + $0x24] sm:$0xf]
    %v853 = vld [vmem:[%s2 + $0x28] sm:$0xf]
    %v854 = vld [vmem:[%s2 + $0x2c] sm:$0xf]
    %v855 = vld [vmem:[%s2 + $0x30] sm:$0xf]
    %v856 = vld [vmem:[%s2 + $0x34] sm:$0xf]
    %v857 = vld [vmem:[%s2 + $0x38] sm:$0xf]
    %v858 = vld [vmem:[%s2 + $0x3c] sm:$0xf]
    %v859 = vunpack.c.l.bf16 %v843
    %v860 = vunpack.c.l.bf16 %v844
    %v861 = vunpack.c.l.bf16 %v845
    %v862 = vunpack.c.l.bf16 %v846
    %v863 = vunpack.c.l.bf16 %v847
    %v864 = vunpack.c.l.bf16 %v848
    %v865 = vunpack.c.l.bf16 %v849
    %v866 = vunpack.c.l.bf16 %v850
    %v867 = vunpack.c.l.bf16 %v851
    %v868 = vunpack.c.l.bf16 %v852
    %v869 = vunpack.c.l.bf16 %v853
    %v870 = vunpack.c.l.bf16 %v854
    %v871 = vunpack.c.l.bf16 %v855
    %v872 = vunpack.c.l.bf16 %v856
    %v873 = vunpack.c.l.bf16 %v857
    %v874 = vunpack.c.l.bf16 %v858
    %s875 = scalar_lea.vmem %s2, 64
    %v876 = vld [vmem:[%s875] sm:$0xf]
    %v877 = vld [vmem:[%s875 + $0x4] sm:$0xf]
    %v878 = vld [vmem:[%s875 + $0x8] sm:$0xf]
    %v879 = vld [vmem:[%s875 + $0xc] sm:$0xf]
    %v880 = vld [vmem:[%s875 + $0x10] sm:$0xf]
    %v881 = vld [vmem:[%s875 + $0x14] sm:$0xf]
    %v882 = vld [vmem:[%s875 + $0x18] sm:$0xf]
    %v883 = vld [vmem:[%s875 + $0x1c] sm:$0xf]
    %v884 = vld [vmem:[%s875 + $0x20] sm:$0xf]
    %v885 = vld [vmem:[%s875 + $0x24] sm:$0xf]
    %v886 = vld [vmem:[%s875 + $0x28] sm:$0xf]
    %v887 = vld [vmem:[%s875 + $0x2c] sm:$0xf]
    %v888 = vld [vmem:[%s875 + $0x30] sm:$0xf]
    %v889 = vld [vmem:[%s875 + $0x34] sm:$0xf]
    %v890 = vld [vmem:[%s875 + $0x38] sm:$0xf]
    %v891 = vld [vmem:[%s875 + $0x3c] sm:$0xf]
    %v892 = vunpack.c.l.bf16 %v876
    %v893 = vunpack.c.l.bf16 %v877
    %v894 = vunpack.c.l.bf16 %v878
    %v895 = vunpack.c.l.bf16 %v879
    %v896 = vunpack.c.l.bf16 %v880
    %v897 = vunpack.c.l.bf16 %v881
    %v898 = vunpack.c.l.bf16 %v882
    %v899 = vunpack.c.l.bf16 %v883
    %v900 = vunpack.c.l.bf16 %v884
    %v901 = vunpack.c.l.bf16 %v885
    %v902 = vunpack.c.l.bf16 %v886
    %v903 = vunpack.c.l.bf16 %v887
    %v904 = vunpack.c.l.bf16 %v888
    %v905 = vunpack.c.l.bf16 %v889
    %v906 = vunpack.c.l.bf16 %v890
    %v907 = vunpack.c.l.bf16 %v891
    %908 = vmatprep.subr.mxu0 0.0
    %909 = vmatpush1.msra.mxu0 %v892
    %910 = vmatprep.subr.mxu0 0.0
    %911 = vmatpush1.msra.mxu0 %v893
    %912 = vmatprep.subr.mxu0 0.0
    %913 = vmatpush1.msra.mxu0 %v894
    %914 = vmatprep.subr.mxu0 0.0
    %915 = vmatpush1.msra.mxu0 %v895
    %916 = vmatprep.subr.mxu0 0.0
    %917 = vmatpush1.msra.mxu0 %v896
    %918 = vmatprep.subr.mxu0 0.0
    %919 = vmatpush1.msra.mxu0 %v897
    %920 = vmatprep.subr.mxu0 0.0
    %921 = vmatpush1.msra.mxu0 %v898
    %922 = vmatprep.subr.mxu0 0.0
    %923 = vmatpush1.msra.mxu0 %v899
    %924 = vmatprep.subr.mxu0 0.0
    %925 = vmatpush1.msra.mxu0 %v900
    %926 = vmatprep.subr.mxu0 0.0
    %927 = vmatpush1.msra.mxu0 %v901
    %928 = vmatprep.subr.mxu0 0.0
    %929 = vmatpush1.msra.mxu0 %v902
    %930 = vmatprep.subr.mxu0 0.0
    %931 = vmatpush1.msra.mxu0 %v903
    %932 = vmatprep.subr.mxu0 0.0
    %933 = vmatpush1.msra.mxu0 %v904
    %934 = vmatprep.subr.mxu0 0.0
    %935 = vmatpush1.msra.mxu0 %v905
    %936 = vmatprep.subr.mxu0 0.0
    %937 = vmatpush1.msra.mxu0 %v906
    %938 = vmatprep.subr.mxu0 0.0
    %939 = vmatpush1.msra.mxu0 %v907
    %940 = vmatprep.subr.mxu0 0.0
    %941 = vmatpush1.msra.mxu0 0.0
    %942 = vmatprep.subr.mxu0 0.0
    %943 = vmatpush1.msra.mxu0 0.0
    %944 = vmatprep.subr.mxu0 0.0
    %945 = vmatpush1.msra.mxu0 0.0
    %946 = vmatprep.subr.mxu0 0.0
    %947 = vmatpush1.msra.mxu0 0.0
    %948 = vmatprep.subr.mxu0 0.0
    %949 = vmatpush1.msra.mxu0 0.0
    %950 = vmatprep.subr.mxu0 0.0
    %951 = vmatpush1.msra.mxu0 0.0
    %952 = vmatprep.subr.mxu0 0.0
    %953 = vmatpush1.msra.mxu0 0.0
    %954 = vmatprep.subr.mxu0 0.0
    %955 = vmatpush1.msra.mxu0 0.0
    %956 = vmatprep.subr.mxu0 0.0
    %957 = vmatpush1.msra.mxu0 0.0
    %958 = vmatprep.subr.mxu0 0.0
    %959 = vmatpush1.msra.mxu0 0.0
    %960 = vmatprep.subr.mxu0 0.0
    %961 = vmatpush1.msra.mxu0 0.0
    %962 = vmatprep.subr.mxu0 0.0
    %963 = vmatpush1.msra.mxu0 0.0
    %964 = vmatprep.subr.mxu0 0.0
    %965 = vmatpush1.msra.mxu0 0.0
    %966 = vmatprep.subr.mxu0 0.0
    %967 = vmatpush1.msra.mxu0 0.0
    %968 = vmatprep.subr.mxu0 0.0
    %969 = vmatpush1.msra.mxu0 0.0
    %970 = vmatprep.subr.mxu0 0.0
    %971 = vmatpush1.msra.mxu0 0.0
    %972 = vmatprep.mubr.f32.mxu0 0.0
    %973 = vmatmul.mubr.f32.gmra.mrb[0].mxu0 %v655
    %v974 = vpop.f32.mrb[0].mxu0
    %v975 = vadd.f32 0.0, %v974
    %v976 = vpop.f32.mrb[0].mxu0
    %977 = vmatprep.mubr.f32.mxu0 0.0
    %978 = vmatmul.mubr.f32.gmra.mrb[0].mxu0 %v656
    %v979 = vpop.f32.mrb[0].mxu0
    %v980 = vadd.f32 0.0, %v979
    %v981 = vpop.f32.mrb[0].mxu0
    %982 = vmatprep.mubr.f32.mxu0 0.0
    %983 = vmatmul.mubr.f32.gmra.mrb[0].mxu0 %v657
    %v984 = vpop.f32.mrb[0].mxu0
    %v985 = vadd.f32 0.0, %v984
    %v986 = vpop.f32.mrb[0].mxu0
    %987 = vmatprep.mubr.f32.mxu0 0.0
    %988 = vmatmul.mubr.f32.gmra.mrb[0].mxu0 %v658
    %v989 = vpop.f32.mrb[0].mxu0
    %v990 = vadd.f32 0.0, %v989
    %v991 = vpop.f32.mrb[0].mxu0
    %992 = vmatprep.mubr.f32.mxu0 0.0
    %993 = vmatmul.mubr.f32.gmra.mrb[0].mxu0 %v659
    %v994 = vpop.f32.mrb[0].mxu0
    %v995 = vadd.f32 0.0, %v994
    %v996 = vpop.f32.mrb[0].mxu0
    %997 = vdwg.mxu0
    %998 = vmatprep.subr.mxu0 0.0
    %999 = vmatpush1.msra.mxu0 %v859
    %1000 = vmatprep.subr.mxu0 0.0
    %1001 = vmatpush1.msra.mxu0 %v860
    %1002 = vmatprep.subr.mxu0 0.0
    %1003 = vmatpush1.msra.mxu0 %v861
    %1004 = vmatprep.subr.mxu0 0.0
    %1005 = vmatpush1.msra.mxu0 %v862
    %1006 = vmatprep.subr.mxu0 0.0
    %1007 = vmatpush1.msra.mxu0 %v863
    %1008 = vmatprep.subr.mxu0 0.0
    %1009 = vmatpush1.msra.mxu0 %v864
    %1010 = vmatprep.subr.mxu0 0.0
    %1011 = vmatpush1.msra.mxu0 %v865
    %1012 = vmatprep.subr.mxu0 0.0
    %1013 = vmatpush1.msra.mxu0 %v866
    %1014 = vmatprep.subr.mxu0 0.0
    %1015 = vmatpush1.msra.mxu0 %v867
    %1016 = vmatprep.subr.mxu0 0.0
    %1017 = vmatpush1.msra.mxu0 %v868
    %1018 = vmatprep.subr.mxu0 0.0
    %1019 = vmatpush1.msra.mxu0 %v869
    %1020 = vmatprep.subr.mxu0 0.0
    %1021 = vmatpush1.msra.mxu0 %v870
    %1022 = vmatprep.subr.mxu0 0.0
    %1023 = vmatpush1.msra.mxu0 %v871
    %1024 = vmatprep.subr.mxu0 0.0
    %1025 = vmatpush1.msra.mxu0 %v872
    %1026 = vmatprep.subr.mxu0 0.0
    %1027 = vmatpush1.msra.mxu0 %v873
    %1028 = vmatprep.subr.mxu0 0.0
    %1029 = vmatpush1.msra.mxu0 %v874
    %1030 = vmatprep.subr.mxu0 0.0
    %1031 = vmatpush1.msra.mxu0 0.0
    %1032 = vmatprep.subr.mxu0 0.0
    %1033 = vmatpush1.msra.mxu0 0.0
    %1034 = vmatprep.subr.mxu0 0.0
    %1035 = vmatpush1.msra.mxu0 0.0
    %1036 = vmatprep.subr.mxu0 0.0
    %1037 = vmatpush1.msra.mxu0 0.0
    %1038 = vmatprep.subr.mxu0 0.0
    %1039 = vmatpush1.msra.mxu0 0.0
    %1040 = vmatprep.subr.mxu0 0.0
    %1041 = vmatpush1.msra.mxu0 0.0
    %1042 = vmatprep.subr.mxu0 0.0
    %1043 = vmatpush1.msra.mxu0 0.0
    %1044 = vmatprep.subr.mxu0 0.0
    %1045 = vmatpush1.msra.mxu0 0.0
    %1046 = vmatprep.subr.mxu0 0.0
    %1047 = vmatpush1.msra.mxu0 0.0
    %1048 = vmatprep.subr.mxu0 0.0
    %1049 = vmatpush1.msra.mxu0 0.0
    %1050 = vmatprep.subr.mxu0 0.0
    %1051 = vmatpush1.msra.mxu0 0.0
    %1052 = vmatprep.subr.mxu0 0.0
    %1053 = vmatpush1.msra.mxu0 0.0
    %1054 = vmatprep.subr.mxu0 0.0
    %1055 = vmatpush1.msra.mxu0 0.0
    %1056 = vmatprep.subr.mxu0 0.0
    %1057 = vmatpush1.msra.mxu0 0.0
    %1058 = vmatprep.subr.mxu0 0.0
    %1059 = vmatpush1.msra.mxu0 0.0
    %1060 = vmatprep.subr.mxu0 0.0
    %1061 = vmatpush1.msra.mxu0 0.0
    %1062 = vmatprep.mubr.f32.mxu0 0.0
    %1063 = vmatmul.mubr.f32.gmra.mrb[0].mxu0 %v730
    %v1064 = vpop.f32.mrb[0].mxu0
    %v1065 = vadd.f32 %v975, %v1064
    %v1066 = vpop.f32.mrb[0].mxu0
    %1067 = vmatprep.mubr.f32.mxu0 0.0
    %1068 = vmatmul.mubr.f32.gmra.mrb[0].mxu0 %v735
    %v1069 = vpop.f32.mrb[0].mxu0
    %v1070 = vadd.f32 %v980, %v1069
    %v1071 = vpop.f32.mrb[0].mxu0
    %1072 = vmatprep.mubr.f32.mxu0 0.0
    %1073 = vmatmul.mubr.f32.gmra.mrb[0].mxu0 %v740
    %v1074 = vpop.f32.mrb[0].mxu0
    %v1075 = vadd.f32 %v985, %v1074
    %v1076 = vpop.f32.mrb[0].mxu0
    %1077 = vmatprep.mubr.f32.mxu0 0.0
    %1078 = vmatmul.mubr.f32.gmra.mrb[0].mxu0 %v745
    %v1079 = vpop.f32.mrb[0].mxu0
    %v1080 = vadd.f32 %v990, %v1079
    %v1081 = vpop.f32.mrb[0].mxu0
    %1082 = vmatprep.mubr.f32.mxu0 0.0
    %1083 = vmatmul.mubr.f32.gmra.mrb[0].mxu0 %v750
    %v1084 = vpop.f32.mrb[0].mxu0
    %v1085 = vadd.f32 %v995, %v1084
    %v1086 = vpop.f32.mrb[0].mxu0
    %1087 = vdwg.mxu0
    %s1088 = scalar_lea.vmem %s2, 128
    %v1089 = vld [vmem:[%s1088] sm:$0xf]
    %v1090 = vld [vmem:[%s1088 + $0x4] sm:$0xf]
    %v1091 = vld [vmem:[%s1088 + $0x8] sm:$0xf]
    %v1092 = vld [vmem:[%s1088 + $0xc] sm:$0xf]
    %v1093 = vld [vmem:[%s1088 + $0x10] sm:$0xf]
    %v1094 = vld [vmem:[%s1088 + $0x14] sm:$0xf]
    %v1095 = vld [vmem:[%s1088 + $0x18] sm:$0xf]
    %v1096 = vld [vmem:[%s1088 + $0x1c] sm:$0xf]
    %v1097 = vld [vmem:[%s1088 + $0x20] sm:$0xf]
    %v1098 = vld [vmem:[%s1088 + $0x24] sm:$0xf]
    %v1099 = vld [vmem:[%s1088 + $0x28] sm:$0xf]
    %v1100 = vld [vmem:[%s1088 + $0x2c] sm:$0xf]
    %v1101 = vld [vmem:[%s1088 + $0x30] sm:$0xf]
    %v1102 = vld [vmem:[%s1088 + $0x34] sm:$0xf]
    %v1103 = vld [vmem:[%s1088 + $0x38] sm:$0xf]
    %v1104 = vld [vmem:[%s1088 + $0x3c] sm:$0xf]
    %v1105 = vunpack.c.l.bf16 %v1089
    %v1106 = vunpack.c.l.bf16 %v1090
    %v1107 = vunpack.c.l.bf16 %v1091
    %v1108 = vunpack.c.l.bf16 %v1092
    %v1109 = vunpack.c.l.bf16 %v1093
    %v1110 = vunpack.c.l.bf16 %v1094
    %v1111 = vunpack.c.l.bf16 %v1095
    %v1112 = vunpack.c.l.bf16 %v1096
    %v1113 = vunpack.c.l.bf16 %v1097
    %v1114 = vunpack.c.l.bf16 %v1098
    %v1115 = vunpack.c.l.bf16 %v1099
    %v1116 = vunpack.c.l.bf16 %v1100
    %v1117 = vunpack.c.l.bf16 %v1101
    %v1118 = vunpack.c.l.bf16 %v1102
    %v1119 = vunpack.c.l.bf16 %v1103
    %v1120 = vunpack.c.l.bf16 %v1104
    %1121 = vmatprep.subr.mxu0 0.0
    %1122 = vmatpush1.msra.mxu0 %v1105
    %1123 = vmatprep.subr.mxu0 0.0
    %1124 = vmatpush1.msra.mxu0 %v1106
    %1125 = vmatprep.subr.mxu0 0.0
    %1126 = vmatpush1.msra.mxu0 %v1107
    %1127 = vmatprep.subr.mxu0 0.0
    %1128 = vmatpush1.msra.mxu0 %v1108
    %1129 = vmatprep.subr.mxu0 0.0
    %1130 = vmatpush1.msra.mxu0 %v1109
    %1131 = vmatprep.subr.mxu0 0.0
    %1132 = vmatpush1.msra.mxu0 %v1110
    %1133 = vmatprep.subr.mxu0 0.0
    %1134 = vmatpush1.msra.mxu0 %v1111
    %1135 = vmatprep.subr.mxu0 0.0
    %1136 = vmatpush1.msra.mxu0 %v1112
    %1137 = vmatprep.subr.mxu0 0.0
    %1138 = vmatpush1.msra.mxu0 %v1113
    %1139 = vmatprep.subr.mxu0 0.0
    %1140 = vmatpush1.msra.mxu0 %v1114
    %1141 = vmatprep.subr.mxu0 0.0
    %1142 = vmatpush1.msra.mxu0 %v1115
    %1143 = vmatprep.subr.mxu0 0.0
    %1144 = vmatpush1.msra.mxu0 %v1116
    %1145 = vmatprep.subr.mxu0 0.0
    %1146 = vmatpush1.msra.mxu0 %v1117
    %1147 = vmatprep.subr.mxu0 0.0
    %1148 = vmatpush1.msra.mxu0 %v1118
    %1149 = vmatprep.subr.mxu0 0.0
    %1150 = vmatpush1.msra.mxu0 %v1119
    %1151 = vmatprep.subr.mxu0 0.0
    %1152 = vmatpush1.msra.mxu0 %v1120
    %1153 = vmatprep.subr.mxu0 0.0
    %1154 = vmatpush1.msra.mxu0 0.0
    %1155 = vmatprep.subr.mxu0 0.0
    %1156 = vmatpush1.msra.mxu0 0.0
    %1157 = vmatprep.subr.mxu0 0.0
    %1158 = vmatpush1.msra.mxu0 0.0
    %1159 = vmatprep.subr.mxu0 0.0
    %1160 = vmatpush1.msra.mxu0 0.0
    %1161 = vmatprep.subr.mxu0 0.0
    %1162 = vmatpush1.msra.mxu0 0.0
    %1163 = vmatprep.subr.mxu0 0.0
    %1164 = vmatpush1.msra.mxu0 0.0
    %1165 = vmatprep.subr.mxu0 0.0
    %1166 = vmatpush1.msra.mxu0 0.0
    %1167 = vmatprep.subr.mxu0 0.0
    %1168 = vmatpush1.msra.mxu0 0.0
    %1169 = vmatprep.subr.mxu0 0.0
    %1170 = vmatpush1.msra.mxu0 0.0
    %1171 = vmatprep.subr.mxu0 0.0
    %1172 = vmatpush1.msra.mxu0 0.0
    %1173 = vmatprep.subr.mxu0 0.0
    %1174 = vmatpush1.msra.mxu0 0.0
    %1175 = vmatprep.subr.mxu0 0.0
    %1176 = vmatpush1.msra.mxu0 0.0
    %1177 = vmatprep.subr.mxu0 0.0
    %1178 = vmatpush1.msra.mxu0 0.0
    %1179 = vmatprep.subr.mxu0 0.0
    %1180 = vmatpush1.msra.mxu0 0.0
    %1181 = vmatprep.subr.mxu0 0.0
    %1182 = vmatpush1.msra.mxu0 0.0
    %1183 = vmatprep.subr.mxu0 0.0
    %1184 = vmatpush1.msra.mxu0 0.0
    %1185 = vmatprep.mubr.f32.mxu0 0.0
    %1186 = vmatmul.mubr.f32.gmra.mrb[0].mxu0 %v820
    %v1187 = vpop.f32.mrb[0].mxu0
    %v1188 = vadd.f32 0.0, %v1187
    %v1189 = vpop.f32.mrb[0].mxu0
    %1190 = vmatprep.mubr.f32.mxu0 0.0
    %1191 = vmatmul.mubr.f32.gmra.mrb[0].mxu0 %v825
    %v1192 = vpop.f32.mrb[0].mxu0
    %v1193 = vadd.f32 0.0, %v1192
    %v1194 = vpop.f32.mrb[0].mxu0
    %1195 = vmatprep.mubr.f32.mxu0 0.0
    %1196 = vmatmul.mubr.f32.gmra.mrb[0].mxu0 %v830
    %v1197 = vpop.f32.mrb[0].mxu0
    %v1198 = vadd.f32 0.0, %v1197
    %v1199 = vpop.f32.mrb[0].mxu0
    %1200 = vmatprep.mubr.f32.mxu0 0.0
    %1201 = vmatmul.mubr.f32.gmra.mrb[0].mxu0 %v835
    %v1202 = vpop.f32.mrb[0].mxu0
    %v1203 = vadd.f32 0.0, %v1202
    %v1204 = vpop.f32.mrb[0].mxu0
    %1205 = vmatprep.mubr.f32.mxu0 0.0
    %1206 = vmatmul.mubr.f32.gmra.mrb[0].mxu0 %v840
    %v1207 = vpop.f32.mrb[0].mxu0
    %v1208 = vadd.f32 0.0, %v1207
    %v1209 = vpop.f32.mrb[0].mxu0
    %1210 = vdwg.mxu0
    %v1211 = vadd.f32 %v1065, %v1188
    %v1212 = vadd.f32 %v1070, %v1193
    %v1213 = vadd.f32 %v1075, %v1198
    %v1214 = vadd.f32 %v1080, %v1203
    %v1215 = vadd.f32 %v1085, %v1208
    %v1216 = vlaneseq
    %v1217 = vshrl.u32 %v1216, 7
    %v1218 = vsub.s32 2, %v1217
    %v1219 = vrot.slane %v51, %v1218
    %v1220 = vmul.f32 %v1211, %v1219
    %v1221 = vmul.f32 %v1212, %v1219
    %v1222 = vmul.f32 %v1213, %v1219
    %v1223 = vmul.f32 %v1214, %v1219
    %v1224 = vmul.f32 %v1215, %v1219
    %v1225 = vlaneseq
    %v1226 = vshrl.u32 %v1225, 7
    %v1227 = vsub.s32 3, %v1226
    %v1228 = vrot.slane %v51, %v1227
    %v1229 = vadd.f32 %v1220, %v1228
    %v1230 = vadd.f32 %v1221, %v1228
    %v1231 = vadd.f32 %v1222, %v1228
    %v1232 = vadd.f32 %v1223, %v1228
    %v1233 = vadd.f32 %v1224, %v1228
    %v1234 = vadd.f32 %v1229, %v655
    %v1235 = vadd.f32 %v1230, %v656
    %v1236 = vadd.f32 %v1231, %v657
    %v1237 = vadd.f32 %v1232, %v658
    %v1238 = vadd.f32 %v1233, %v659
    %v1239 = vmax.f32 %v1234, 0.0
    %v1240 = vmax.f32 %v1235, 0.0
    %v1241 = vmax.f32 %v1236, 0.0
    %v1242 = vmax.f32 %v1237, 0.0
    %v1243 = vmax.f32 %v1238, 0.0
    %v1245 = vsel %vm68, %v1243, 0
    %1247 = vmatprep.subr.mxu0 0.0
    %1248 = vmatpush1.msra.mxu0 %v1239
    %1249 = vmatprep.subr.mxu0 0.0
    %1250 = vmatpush1.msra.mxu0 %v1240
    %1251 = vmatprep.subr.mxu0 0.0
    %1252 = vmatpush1.msra.mxu0 %v1241
    %1253 = vmatprep.subr.mxu0 0.0
    %1254 = vmatpush1.msra.mxu0 %v1242
    %1255 = vmatprep.subr.mxu0 0.0
    %1256 = vmatpush1.msra.mxu0 %v1245
    %1257 = vmatprep.subr.mxu0 0.0
    %1258 = vmatpush1.msra.mxu0 0.0
    %1259 = vmatprep.subr.mxu0 0.0
    %1260 = vmatpush1.msra.mxu0 0.0
    %1261 = vmatprep.subr.mxu0 0.0
    %1262 = vmatpush1.msra.mxu0 0.0
    %1263 = vmatprep.subr.mxu0 0.0
    %1264 = vmatpush1.msra.mxu0 0.0
    %1265 = vmatprep.subr.mxu0 0.0
    %1266 = vmatpush1.msra.mxu0 0.0
    %1267 = vmatprep.subr.mxu0 0.0
    %1268 = vmatpush1.msra.mxu0 0.0
    %1269 = vmatprep.subr.mxu0 0.0
    %1270 = vmatpush1.msra.mxu0 0.0
    %1271 = vmatprep.subr.mxu0 0.0
    %1272 = vmatpush1.msra.mxu0 0.0
    %1273 = vmatprep.subr.mxu0 0.0
    %1274 = vmatpush1.msra.mxu0 0.0
    %1275 = vmatprep.subr.mxu0 0.0
    %1276 = vmatpush1.msra.mxu0 0.0
    %1277 = vmatprep.subr.mxu0 0.0
    %1278 = vmatpush1.msra.mxu0 0.0
    %1279 = vmatprep.subr.mxu0 0.0
    %1280 = vmatpush1.msra.mxu0 0.0
    %1281 = vmatprep.subr.mxu0 0.0
    %1282 = vmatpush1.msra.mxu0 0.0
    %1283 = vmatprep.subr.mxu0 0.0
    %1284 = vmatpush1.msra.mxu0 0.0
    %1285 = vmatprep.subr.mxu0 0.0
    %1286 = vmatpush1.msra.mxu0 0.0
    %1287 = vmatprep.subr.mxu0 0.0
    %1288 = vmatpush1.msra.mxu0 0.0
    %1289 = vmatprep.subr.mxu0 0.0
    %1290 = vmatpush1.msra.mxu0 0.0
    %1291 = vmatprep.subr.mxu0 0.0
    %1292 = vmatpush1.msra.mxu0 0.0
    %1293 = vmatprep.subr.mxu0 0.0
    %1294 = vmatpush1.msra.mxu0 0.0
    %1295 = vmatprep.subr.mxu0 0.0
    %1296 = vmatpush1.msra.mxu0 0.0
    %1297 = vmatprep.subr.mxu0 0.0
    %1298 = vmatpush1.msra.mxu0 0.0
    %1299 = vmatprep.subr.mxu0 0.0
    %1300 = vmatpush1.msra.mxu0 0.0
    %1301 = vmatprep.subr.mxu0 0.0
    %1302 = vmatpush1.msra.mxu0 0.0
    %1303 = vmatprep.subr.mxu0 0.0
    %1304 = vmatpush1.msra.mxu0 0.0
    %1305 = vmatprep.subr.mxu0 0.0
    %1306 = vmatpush1.msra.mxu0 0.0
    %1307 = vmatprep.subr.mxu0 0.0
    %1308 = vmatpush1.msra.mxu0 0.0
    %1309 = vmatprep.subr.mxu0 0.0
    %1310 = vmatpush1.msra.mxu0 0.0
    %1311 = vmatprep.mubr.f32.mxu0 0.0
    %1312 = vmatmul.mubr.f32.gmra.mrb[0].mxu0 %v163
    %v1313 = vpop.f32.mrb[0].mxu0
    %v1314 = vadd.f32 0.0, %v1313
    %v1315 = vpop.f32.mrb[0].mxu0
    %1316 = vmatprep.mubr.f32.mxu0 0.0
    %1317 = vmatmul.mubr.f32.gmra.mrb[0].mxu0 %v166
    %v1318 = vpop.f32.mrb[0].mxu0
    %v1319 = vadd.f32 0.0, %v1318
    %v1320 = vpop.f32.mrb[0].mxu0
    %1321 = vmatprep.mubr.f32.mxu0 0.0
    %1322 = vmatmul.mubr.f32.gmra.mrb[0].mxu0 %v169
    %v1323 = vpop.f32.mrb[0].mxu0
    %v1324 = vadd.f32 0.0, %v1323
    %v1325 = vpop.f32.mrb[0].mxu0
    %1326 = vmatprep.mubr.f32.mxu0 0.0
    %1327 = vmatmul.mubr.f32.gmra.mrb[0].mxu0 %v172
    %v1328 = vpop.f32.mrb[0].mxu0
    %v1329 = vadd.f32 0.0, %v1328
    %v1330 = vpop.f32.mrb[0].mxu0
    %1331 = vmatprep.mubr.f32.mxu0 0.0
    %1332 = vmatmul.mubr.f32.gmra.mrb[0].mxu0 %v175
    %v1333 = vpop.f32.mrb[0].mxu0
    %v1334 = vadd.f32 0.0, %v1333
    %v1335 = vpop.f32.mrb[0].mxu0
    %1336 = vdwg.mxu0
    %v1337 = vmax.f32 %v1239, %v1314
    %v1338 = vmax.f32 %v1240, %v1319
    %v1339 = vmax.f32 %v1241, %v1324
    %v1340 = vmax.f32 %v1242, %v1329
    %v1341 = vmax.f32 %v1243, %v1334
    %1342 = vrot.lane.b32.xlu0 %v1337, 64
    %v1343 = vpop.permute.xlu0 %1342
    %1344 = vrot.lane.b32.xlu0 %v1338, 64
    %v1345 = vpop.permute.xlu0 %1344
    %1346 = vrot.lane.b32.xlu0 %v1339, 64
    %v1347 = vpop.permute.xlu0 %1346
    %1348 = vrot.lane.b32.xlu0 %v1340, 64
    %v1349 = vpop.permute.xlu0 %1348
    %1350 = vrot.lane.b32.xlu0 %v1341, 64
    %v1351 = vpop.permute.xlu0 %1350
    %v1352 = vmax.f32 %v1337, %v1343
    %v1353 = vmax.f32 %v1338, %v1345
    %v1354 = vmax.f32 %v1339, %v1347
    %v1355 = vmax.f32 %v1340, %v1349
    %v1356 = vmax.f32 %v1341, %v1351
    %v1357 = vld [vmem:[%s6] sm:$0xf]
    %v1358 = vld [vmem:[%s6 + $0x4] sm:$0xf]
    %v1359 = vld [vmem:[%s6 + $0x8] sm:$0xf]
    %v1360 = vld [vmem:[%s6 + $0xc] sm:$0xf]
    %v1361 = vld [vmem:[%s6 + $0x10] sm:$0xf]
    %v1362 = vld [vmem:[%s6 + $0x14] sm:$0xf]
    %v1363 = vld [vmem:[%s6 + $0x18] sm:$0xf]
    %v1364 = vld [vmem:[%s6 + $0x1c] sm:$0xf]
    %v1365 = vld [vmem:[%s6 + $0x20] sm:$0xf]
    %v1366 = vld [vmem:[%s6 + $0x24] sm:$0xf]
    %v1367 = vld [vmem:[%s6 + $0x28] sm:$0xf]
    %v1368 = vld [vmem:[%s6 + $0x2c] sm:$0xf]
    %v1369 = vld [vmem:[%s6 + $0x30] sm:$0xf]
    %v1370 = vld [vmem:[%s6 + $0x34] sm:$0xf]
    %v1371 = vld [vmem:[%s6 + $0x38] sm:$0xf]
    %v1372 = vld [vmem:[%s6 + $0x3c] sm:$0xf]
    %v1373 = vunpack.c.l.bf16 %v1357
    %v1374 = vunpack.c.l.bf16 %v1358
    %v1375 = vunpack.c.l.bf16 %v1359
    %v1376 = vunpack.c.l.bf16 %v1360
    %v1377 = vunpack.c.l.bf16 %v1361
    %v1378 = vunpack.c.l.bf16 %v1362
    %v1379 = vunpack.c.l.bf16 %v1363
    %v1380 = vunpack.c.l.bf16 %v1364
    %v1381 = vunpack.c.l.bf16 %v1365
    %v1382 = vunpack.c.l.bf16 %v1366
    %v1383 = vunpack.c.l.bf16 %v1367
    %v1384 = vunpack.c.l.bf16 %v1368
    %v1385 = vunpack.c.l.bf16 %v1369
    %v1386 = vunpack.c.l.bf16 %v1370
    %v1387 = vunpack.c.l.bf16 %v1371
    %v1388 = vunpack.c.l.bf16 %v1372
    %1389 = vmatprep.subr.mxu0 0.0
    %1390 = vmatpush1.msra.mxu0 %v1373
    %1391 = vmatprep.subr.mxu0 0.0
    %1392 = vmatpush1.msra.mxu0 %v1374
    %1393 = vmatprep.subr.mxu0 0.0
    %1394 = vmatpush1.msra.mxu0 %v1375
    %1395 = vmatprep.subr.mxu0 0.0
    %1396 = vmatpush1.msra.mxu0 %v1376
    %1397 = vmatprep.subr.mxu0 0.0
    %1398 = vmatpush1.msra.mxu0 %v1377
    %1399 = vmatprep.subr.mxu0 0.0
    %1400 = vmatpush1.msra.mxu0 %v1378
    %1401 = vmatprep.subr.mxu0 0.0
    %1402 = vmatpush1.msra.mxu0 %v1379
    %1403 = vmatprep.subr.mxu0 0.0
    %1404 = vmatpush1.msra.mxu0 %v1380
    %1405 = vmatprep.subr.mxu0 0.0
    %1406 = vmatpush1.msra.mxu0 %v1381
    %1407 = vmatprep.subr.mxu0 0.0
    %1408 = vmatpush1.msra.mxu0 %v1382
    %1409 = vmatprep.subr.mxu0 0.0
    %1410 = vmatpush1.msra.mxu0 %v1383
    %1411 = vmatprep.subr.mxu0 0.0
    %1412 = vmatpush1.msra.mxu0 %v1384
    %1413 = vmatprep.subr.mxu0 0.0
    %1414 = vmatpush1.msra.mxu0 %v1385
    %1415 = vmatprep.subr.mxu0 0.0
    %1416 = vmatpush1.msra.mxu0 %v1386
    %1417 = vmatprep.subr.mxu0 0.0
    %1418 = vmatpush1.msra.mxu0 %v1387
    %1419 = vmatprep.subr.mxu0 0.0
    %1420 = vmatpush1.msra.mxu0 %v1388
    %1421 = vmatprep.subr.mxu0 0.0
    %1422 = vmatpush1.msra.mxu0 0.0
    %1423 = vmatprep.subr.mxu0 0.0
    %1424 = vmatpush1.msra.mxu0 0.0
    %1425 = vmatprep.subr.mxu0 0.0
    %1426 = vmatpush1.msra.mxu0 0.0
    %1427 = vmatprep.subr.mxu0 0.0
    %1428 = vmatpush1.msra.mxu0 0.0
    %1429 = vmatprep.subr.mxu0 0.0
    %1430 = vmatpush1.msra.mxu0 0.0
    %1431 = vmatprep.subr.mxu0 0.0
    %1432 = vmatpush1.msra.mxu0 0.0
    %1433 = vmatprep.subr.mxu0 0.0
    %1434 = vmatpush1.msra.mxu0 0.0
    %1435 = vmatprep.subr.mxu0 0.0
    %1436 = vmatpush1.msra.mxu0 0.0
    %1437 = vmatprep.subr.mxu0 0.0
    %1438 = vmatpush1.msra.mxu0 0.0
    %1439 = vmatprep.subr.mxu0 0.0
    %1440 = vmatpush1.msra.mxu0 0.0
    %1441 = vmatprep.subr.mxu0 0.0
    %1442 = vmatpush1.msra.mxu0 0.0
    %1443 = vmatprep.subr.mxu0 0.0
    %1444 = vmatpush1.msra.mxu0 0.0
    %1445 = vmatprep.subr.mxu0 0.0
    %1446 = vmatpush1.msra.mxu0 0.0
    %1447 = vmatprep.subr.mxu0 0.0
    %1448 = vmatpush1.msra.mxu0 0.0
    %1449 = vmatprep.subr.mxu0 0.0
    %1450 = vmatpush1.msra.mxu0 0.0
    %1451 = vmatprep.subr.mxu0 0.0
    %1452 = vmatpush1.msra.mxu0 0.0
    %1453 = vmatprep.mubr.f32.mxu0 0.0
    %1454 = vmatmul.mubr.f32.gmra.mrb[0].mxu0 %v1352
    %v1455 = vpop.f32.mrb[0].mxu0
    %v1456 = vadd.f32 0.0, %v1455
    %v1457 = vpop.f32.mrb[0].mxu0
    %1458 = vmatprep.mubr.f32.mxu0 0.0
    %1459 = vmatmul.mubr.f32.gmra.mrb[0].mxu0 %v1353
    %v1460 = vpop.f32.mrb[0].mxu0
    %v1461 = vadd.f32 0.0, %v1460
    %v1462 = vpop.f32.mrb[0].mxu0
    %1463 = vmatprep.mubr.f32.mxu0 0.0
    %1464 = vmatmul.mubr.f32.gmra.mrb[0].mxu0 %v1354
    %v1465 = vpop.f32.mrb[0].mxu0
    %v1466 = vadd.f32 0.0, %v1465
    %v1467 = vpop.f32.mrb[0].mxu0
    %1468 = vmatprep.mubr.f32.mxu0 0.0
    %1469 = vmatmul.mubr.f32.gmra.mrb[0].mxu0 %v1355
    %v1470 = vpop.f32.mrb[0].mxu0
    %v1471 = vadd.f32 0.0, %v1470
    %v1472 = vpop.f32.mrb[0].mxu0
    %1473 = vmatprep.mubr.f32.mxu0 0.0
    %1474 = vmatmul.mubr.f32.gmra.mrb[0].mxu0 %v1356
    %v1475 = vpop.f32.mrb[0].mxu0
    %v1476 = vadd.f32 0.0, %v1475
    %v1477 = vpop.f32.mrb[0].mxu0
    %1478 = vdwg.mxu0
    %v1479 = vld [vmem:[%s7] sm:$0xff]
    %v1480 = vld [vmem:[%s7 + $0x8] sm:$0xff]
    %v1481 = vld [vmem:[%s7 + $0x10] sm:$0xff]
    %v1482 = vld [vmem:[%s7 + $0x18] sm:$0xff]
    %v1483 = vld [vmem:[%s7 + $0x20] sm:$0xf]
    %v1484 = vmul.f32 %v1456, %v1479
    %v1485 = vmul.f32 %v1461, %v1480
    %v1486 = vmul.f32 %v1466, %v1481
    %v1487 = vmul.f32 %v1471, %v1482
    %v1488 = vmul.f32 %v1476, %v1483
    %v1489 = vld [vmem:[%s8] sm:$0xff]
    %v1490 = vld [vmem:[%s8 + $0x8] sm:$0xff]
    %v1491 = vld [vmem:[%s8 + $0x10] sm:$0xff]
    %v1492 = vld [vmem:[%s8 + $0x18] sm:$0xff]
    %v1493 = vld [vmem:[%s8 + $0x20] sm:$0xff]
    %v1494 = vld [vmem:[%s8 + $0x28] sm:$0xff]
    %v1495 = vld [vmem:[%s8 + $0x30] sm:$0xff]
    %v1496 = vld [vmem:[%s8 + $0x38] sm:$0xff]
    %v1497 = vld [vmem:[%s8 + $0x40] sm:$0xff]
    %v1498 = vld [vmem:[%s8 + $0x48] sm:$0xff]
    %v1499 = vld [vmem:[%s8 + $0x50] sm:$0xff]
    %v1500 = vld [vmem:[%s8 + $0x58] sm:$0xff]
    %v1501 = vld [vmem:[%s8 + $0x60] sm:$0xff]
    %v1502 = vld [vmem:[%s8 + $0x68] sm:$0xff]
    %v1503 = vld [vmem:[%s8 + $0x70] sm:$0xff]
    %v1504 = vld [vmem:[%s8 + $0x78] sm:$0xff]
    %1505 = vmatprep.subr.mxu0 0.0
    %1506 = vmatpush1.msra.mxu0 %v1489
    %1507 = vmatprep.subr.mxu0 0.0
    %1508 = vmatpush1.msra.mxu0 %v1490
    %1509 = vmatprep.subr.mxu0 0.0
    %1510 = vmatpush1.msra.mxu0 %v1491
    %1511 = vmatprep.subr.mxu0 0.0
    %1512 = vmatpush1.msra.mxu0 %v1492
    %1513 = vmatprep.subr.mxu0 0.0
    %1514 = vmatpush1.msra.mxu0 %v1493
    %1515 = vmatprep.subr.mxu0 0.0
    %1516 = vmatpush1.msra.mxu0 %v1494
    %1517 = vmatprep.subr.mxu0 0.0
    %1518 = vmatpush1.msra.mxu0 %v1495
    %1519 = vmatprep.subr.mxu0 0.0
    %1520 = vmatpush1.msra.mxu0 %v1496
    %1521 = vmatprep.subr.mxu0 0.0
    %1522 = vmatpush1.msra.mxu0 %v1497
    %1523 = vmatprep.subr.mxu0 0.0
    %1524 = vmatpush1.msra.mxu0 %v1498
    %1525 = vmatprep.subr.mxu0 0.0
    %1526 = vmatpush1.msra.mxu0 %v1499
    %1527 = vmatprep.subr.mxu0 0.0
    %1528 = vmatpush1.msra.mxu0 %v1500
    %1529 = vmatprep.subr.mxu0 0.0
    %1530 = vmatpush1.msra.mxu0 %v1501
    %1531 = vmatprep.subr.mxu0 0.0
    %1532 = vmatpush1.msra.mxu0 %v1502
    %1533 = vmatprep.subr.mxu0 0.0
    %1534 = vmatpush1.msra.mxu0 %v1503
    %1535 = vmatprep.subr.mxu0 0.0
    %1536 = vmatpush1.msra.mxu0 %v1504
    %1537 = vmatprep.subr.mxu0 0.0
    %1538 = vmatpush1.msra.mxu0 0.0
    %1539 = vmatprep.subr.mxu0 0.0
    %1540 = vmatpush1.msra.mxu0 0.0
    %1541 = vmatprep.subr.mxu0 0.0
    %1542 = vmatpush1.msra.mxu0 0.0
    %1543 = vmatprep.subr.mxu0 0.0
    %1544 = vmatpush1.msra.mxu0 0.0
    %1545 = vmatprep.subr.mxu0 0.0
    %1546 = vmatpush1.msra.mxu0 0.0
    %1547 = vmatprep.subr.mxu0 0.0
    %1548 = vmatpush1.msra.mxu0 0.0
    %1549 = vmatprep.subr.mxu0 0.0
    %1550 = vmatpush1.msra.mxu0 0.0
    %1551 = vmatprep.subr.mxu0 0.0
    %1552 = vmatpush1.msra.mxu0 0.0
    %1553 = vmatprep.subr.mxu0 0.0
    %1554 = vmatpush1.msra.mxu0 0.0
    %1555 = vmatprep.subr.mxu0 0.0
    %1556 = vmatpush1.msra.mxu0 0.0
    %1557 = vmatprep.subr.mxu0 0.0
    %1558 = vmatpush1.msra.mxu0 0.0
    %1559 = vmatprep.subr.mxu0 0.0
    %1560 = vmatpush1.msra.mxu0 0.0
    %1561 = vmatprep.subr.mxu0 0.0
    %1562 = vmatpush1.msra.mxu0 0.0
    %1563 = vmatprep.subr.mxu0 0.0
    %1564 = vmatpush1.msra.mxu0 0.0
    %1565 = vmatprep.subr.mxu0 0.0
    %1566 = vmatpush1.msra.mxu0 0.0
    %1567 = vmatprep.subr.mxu0 0.0
    %1568 = vmatpush1.msra.mxu0 0.0
    %1569 = vmatprep.mubr.f32.mxu0 0.0
    %1570 = vmatmul.mubr.f32.gmra.mrb[0].mxu0 %v1484
    %v1571 = vpop.f32.mrb[0].mxu0
    %v1572 = vadd.f32 0.0, %v1571
    %v1573 = vpop.f32.mrb[0].mxu0
    %1574 = vmatprep.mubr.f32.mxu0 0.0
    %1575 = vmatmul.mubr.f32.gmra.mrb[0].mxu0 %v1485
    %v1576 = vpop.f32.mrb[0].mxu0
    %v1577 = vadd.f32 0.0, %v1576
    %v1578 = vpop.f32.mrb[0].mxu0
    %1579 = vmatprep.mubr.f32.mxu0 0.0
    %1580 = vmatmul.mubr.f32.gmra.mrb[0].mxu0 %v1486
    %v1581 = vpop.f32.mrb[0].mxu0
    %v1582 = vadd.f32 0.0, %v1581
    %v1583 = vpop.f32.mrb[0].mxu0
    %1584 = vmatprep.mubr.f32.mxu0 0.0
    %1585 = vmatmul.mubr.f32.gmra.mrb[0].mxu0 %v1487
    %v1586 = vpop.f32.mrb[0].mxu0
    %v1587 = vadd.f32 0.0, %v1586
    %v1588 = vpop.f32.mrb[0].mxu0
    %1589 = vmatprep.mubr.f32.mxu0 0.0
    %1590 = vmatmul.mubr.f32.gmra.mrb[0].mxu0 %v1488
    %v1591 = vpop.f32.mrb[0].mxu0
    %v1592 = vadd.f32 0.0, %v1591
    %v1593 = vpop.f32.mrb[0].mxu0
    %1594 = vdwg.mxu0
    %v1595 = vld [vmem:[%s9] sm:$0x3]
    %v1596 = vlaneseq
    %v1597 = vshrl.u32 %v1596, 7
    %v1598 = vsub.s32 4, %v1597
    %v1599 = vrot.slane %v51, %v1598
    %v1601 = vsel %vm52, %v1595, 0
    %v1604 = vsel %vm68, %v1592, 0
    %1606 = vmatprep.subr.mxu0 0.0
    %1607 = vmatpush1.msra.mxu0 %v1572
    %1608 = vmatprep.subr.mxu0 0.0
    %1609 = vmatpush1.msra.mxu0 %v1577
    %1610 = vmatprep.subr.mxu0 0.0
    %1611 = vmatpush1.msra.mxu0 %v1582
    %1612 = vmatprep.subr.mxu0 0.0
    %1613 = vmatpush1.msra.mxu0 %v1587
    %1614 = vmatprep.subr.mxu0 0.0
    %1615 = vmatpush1.msra.mxu0 %v1604
    %1616 = vmatprep.subr.mxu0 0.0
    %1617 = vmatpush1.msra.mxu0 0.0
    %1618 = vmatprep.subr.mxu0 0.0
    %1619 = vmatpush1.msra.mxu0 0.0
    %1620 = vmatprep.subr.mxu0 0.0
    %1621 = vmatpush1.msra.mxu0 0.0
    %1622 = vmatprep.subr.mxu0 0.0
    %1623 = vmatpush1.msra.mxu0 0.0
    %1624 = vmatprep.subr.mxu0 0.0
    %1625 = vmatpush1.msra.mxu0 0.0
    %1626 = vmatprep.subr.mxu0 0.0
    %1627 = vmatpush1.msra.mxu0 0.0
    %1628 = vmatprep.subr.mxu0 0.0
    %1629 = vmatpush1.msra.mxu0 0.0
    %1630 = vmatprep.subr.mxu0 0.0
    %1631 = vmatpush1.msra.mxu0 0.0
    %1632 = vmatprep.subr.mxu0 0.0
    %1633 = vmatpush1.msra.mxu0 0.0
    %1634 = vmatprep.subr.mxu0 0.0
    %1635 = vmatpush1.msra.mxu0 0.0
    %1636 = vmatprep.subr.mxu0 0.0
    %1637 = vmatpush1.msra.mxu0 0.0
    %1638 = vmatprep.subr.mxu0 0.0
    %1639 = vmatpush1.msra.mxu0 0.0
    %1640 = vmatprep.subr.mxu0 0.0
    %1641 = vmatpush1.msra.mxu0 0.0
    %1642 = vmatprep.subr.mxu0 0.0
    %1643 = vmatpush1.msra.mxu0 0.0
    %1644 = vmatprep.subr.mxu0 0.0
    %1645 = vmatpush1.msra.mxu0 0.0
    %1646 = vmatprep.subr.mxu0 0.0
    %1647 = vmatpush1.msra.mxu0 0.0
    %1648 = vmatprep.subr.mxu0 0.0
    %1649 = vmatpush1.msra.mxu0 0.0
    %1650 = vmatprep.subr.mxu0 0.0
    %1651 = vmatpush1.msra.mxu0 0.0
    %1652 = vmatprep.subr.mxu0 0.0
    %1653 = vmatpush1.msra.mxu0 0.0
    %1654 = vmatprep.subr.mxu0 0.0
    %1655 = vmatpush1.msra.mxu0 0.0
    %1656 = vmatprep.subr.mxu0 0.0
    %1657 = vmatpush1.msra.mxu0 0.0
    %1658 = vmatprep.subr.mxu0 0.0
    %1659 = vmatpush1.msra.mxu0 0.0
    %1660 = vmatprep.subr.mxu0 0.0
    %1661 = vmatpush1.msra.mxu0 0.0
    %1662 = vmatprep.subr.mxu0 0.0
    %1663 = vmatpush1.msra.mxu0 0.0
    %1664 = vmatprep.subr.mxu0 0.0
    %1665 = vmatpush1.msra.mxu0 0.0
    %1666 = vmatprep.subr.mxu0 0.0
    %1667 = vmatpush1.msra.mxu0 0.0
    %1668 = vmatprep.subr.mxu0 0.0
    %1669 = vmatpush1.msra.mxu0 0.0
    %1670 = vmatprep.mubr.f32.mxu0 0.0
    %1671 = vmatmul.mubr.f32.gmra.mrb[0].mxu0 %v1601
    %v1672 = vpop.f32.mrb[0].mxu0
    %v1673 = vadd.f32 %v1599, %v1672
    %v1674 = vpop.f32.mrb[0].mxu0
    %1675 = vdwg.mxu0
    %vm1676 = vcmask 74752
    %1677 = vst.msk [vmem:[#allocation2] sm:$0x3] %vm1676, %v1673
    // Predicated region
    $region42: #{a_call__.1} parent=1 // pred_check
      _
    $region43: #{a_call__.1} parent=1 // pred_check_branch
      %1679 = sbr.rel (0) target = $region45
    $region44: #{a_call__.1} parent=1 // pred_region
      %s1681 = ssub.s32 32, 32
      %1682 = vsyncadd [#allocation3], %s1681
      %s1684 = sshll.u32 [#allocation2], 4
      %s1685 = int_to_ptr.vmem [resolvable:$true] %s1684
      %1687 = dma.vmem_to_hbm [thread:$0]  %s1685, 32, %s10, [#allocation3]
    $region45: #{a_call__.1} parent=1 // pred_fallthru
      _
    // Predicated region
    $region46: #{a_call__.1} parent=1 // pred_check
      _
    $region47: #{a_call__.1} parent=1 // pred_check_branch
      %1689 = sbr.rel (0) target = $region49
    $region48: #{a_call__.1} parent=1 // pred_region
      %1690 = dma.done [#allocation3], 32
    $region49: #{a_call__.1} parent=1 // pred_fallthru
      _
    %1691 = vsyncpa [#allocation3], 1

</llo_original>
